<compile_context>
chip_gen: v7x
topology: tpu7x:2x2x1
jax: 0.10.0
libtpu: 0.0.40
codegen_flags: <defaults>
</compile_context>

<pallas_src>
import functools

import jax
import jax.numpy as jnp
from jax.experimental import pallas as pl
from jax.experimental.pallas import tpu as pltpu


def _round_up(x, m):
    return (x + m - 1) // m * m


def _scoped_vmem_limit(budget_bytes):
    # Explicit scoped-VMEM limit derived from the actual block budget, with
    # generous headroom, capped below v7x's 64 MiB physical VMEM.
    return int(min(64 * 1024 * 1024, 2 * budget_bytes + 16 * 1024 * 1024))


# ---------------------------------------------------------------------------
# Tiled matmul-with-bias kernel: y = x @ w + b (used for the hoisted input
# projection and for the un-fused vocab projection).
# ---------------------------------------------------------------------------
def _matmul_bias_kernel(x_ref, w_ref, b_ref, o_ref):
    o_ref[...] = (
        jnp.dot(x_ref[...], w_ref[...], preferred_element_type=jnp.float32)
        + b_ref[...]
    ).astype(o_ref.dtype)


def matmul_bias(x, w, b, *, tm=128, tn=2048):
    """Tiled y = x @ w + b on the MXU. Pads M/N to tile multiples internally."""
    m, k = x.shape
    k2, n = w.shape
    assert k == k2 and b.shape == (n,)

    tm = min(tm, _round_up(m, 8))
    tn = min(tn, _round_up(n, 128))
    mp = _round_up(m, tm)
    np_ = _round_up(n, tn)

    xp = jnp.pad(x, ((0, mp - m), (0, 0))) if mp != m else x
    wp = jnp.pad(w, ((0, 0), (0, np_ - n))) if np_ != n else w
    bp = jnp.pad(b, (0, np_ - n)) if np_ != n else b
    bp = bp.reshape(1, np_)

    # Double-buffered in/out blocks (fp32), K resident.
    budget = 4 * 2 * (tm * k + k * tn + tn + tm * tn)
    out = pl.pallas_call(
        _matmul_bias_kernel,
        out_shape=jax.ShapeDtypeStruct((mp, np_), jnp.float32),
        grid_spec=pltpu.PrefetchScalarGridSpec(
            num_scalar_prefetch=0,
            grid=(mp // tm, np_ // tn),
            in_specs=[
                pl.BlockSpec((tm, k), lambda i, j: (i, 0)),
                pl.BlockSpec((k, tn), lambda i, j: (0, j)),
                pl.BlockSpec((1, tn), lambda i, j: (0, j)),
            ],
            out_specs=pl.BlockSpec((tm, tn), lambda i, j: (i, j)),
        ),
        compiler_params=pltpu.CompilerParams(
            dimension_semantics=("parallel", "parallel"),
            vmem_limit_bytes=_scoped_vmem_limit(budget),
        ),
    )(xp, wp, bp)
    return out[:m, :n]


# ---------------------------------------------------------------------------
# Sequential LSTM recurrence kernel (input projection already folded in).
# ---------------------------------------------------------------------------
def _lstm_recurrence_kernel(pre_ref, whh_ref, hseq_ref, h_ref, c_ref, *, hp, tc):
    """One (batch_block, time_chunk) grid step of the LSTM recurrence.

    pre_ref:   (Tc, TB, 4*Hp)  precomputed x_t @ W_ih + (b_ih + b_hh)
    whh_ref:   (Hp, 4*Hp)      recurrent weights (constant block index)
    hseq_ref:  (Tc, TB, Hp)    hidden-state outputs for this chunk
    h_ref/c_ref: (TB, Hp)      VMEM scratch carried across the time grid axis
    """
    # Time is the innermost ("arbitrary") grid axis; reset state at the start
    # of every batch block.
    @pl.when(pl.program_id(1) == 0)
    def _():
        h_ref[...] = jnp.zeros_like(h_ref)
        c_ref[...] = jnp.zeros_like(c_ref)

    def step(t, carry):
        h, c = carry
        # Only the H->4H recurrent matmul stays on the serial critical path.
        gates = pre_ref[t] + jnp.dot(
            h, whh_ref[...], preferred_element_type=jnp.float32)
        # PyTorch gate order (i, f, g, o); Hp is a multiple of 128 so the
        # slices stay lane-tile aligned.
        i_g = jax.nn.sigmoid(gates[:, 0 * hp:1 * hp])
        f_g = jax.nn.sigmoid(gates[:, 1 * hp:2 * hp])
        g_g = jnp.tanh(gates[:, 2 * hp:3 * hp])
        o_g = jax.nn.sigmoid(gates[:, 3 * hp:4 * hp])
        c_new = f_g * c + i_g * g_g
        h_new = o_g * jnp.tanh(c_new)
        hseq_ref[t] = h_new
        return h_new, c_new

    h_fin, c_fin = jax.lax.fori_loop(
        0, tc, step, (h_ref[...], c_ref[...]), unroll=True)
    h_ref[...] = h_fin
    c_ref[...] = c_fin


# ---------------------------------------------------------------------------
# Full forward pass.
# ---------------------------------------------------------------------------
def lstm_language_model_forward(token_ids, params, *, time_chunk=8,
                                batch_block=8):
    """token_ids: (B, T) int32 -> logits (B, T, V) float32."""
    embed = params["embed"]          # (V, E)
    w_ih = params["w_ih"]            # (E, 4H)  transposed torch weight_ih_l0
    w_hh = params["w_hh"]            # (H, 4H)  transposed torch weight_hh_l0
    b = params["b"]                  # (4H,)    bias_ih + bias_hh
    w_fc = params["w_fc"]            # (H, V)   transposed torch fc.weight
    b_fc = params["b_fc"]            # (V,)

    bsz, seq = token_ids.shape
    vocab, edim = embed.shape
    hdim = w_hh.shape[0]

    # ---- (8, 128)-aligned padded sizes -------------------------------------
    hp = _round_up(hdim, 128)              # hidden -> lane multiple
    bp = _round_up(bsz, 8)                 # batch  -> sublane multiple
    tb = min(batch_block, bp)              # batch block (parallel grid axis)
    bp = _round_up(bp, tb)
    tc = min(time_chunk, seq)              # time steps per grid step
    tp = _round_up(seq, tc)

    def pad_gate_cols(a):
        # Pad the trailing 4*H gate axis to 4*Hp, per gate block (i, f, g, o),
        # so gate slices in the kernel stay at k*Hp offsets.
        if hp == hdim:
            return a
        lead = a.shape[:-1]
        a4 = a.reshape(lead + (4, hdim))
        a4 = jnp.pad(a4, [(0, 0)] * len(lead) + [(0, 0), (0, hp - hdim)])
        return a4.reshape(lead + (4 * hp,))

    w_ih_p = pad_gate_cols(w_ih)                                    # (E, 4Hp)
    b_p = pad_gate_cols(b)                                          # (4Hp,)
    w_hh_p = pad_gate_cols(jnp.pad(w_hh, ((0, hp - hdim), (0, 0)))) # (Hp, 4Hp)
    w_fc_p = jnp.pad(w_fc, ((0, hp - hdim), (0, 0)))                # (Hp, V)

    # ---- 1) embedding lookup (gather) — plain-JAX glue ----------------------
    x_emb = jnp.take(embed, token_ids, axis=0)                      # (B, T, E)
    x_emb = jnp.pad(x_emb, ((0, bp - bsz), (0, tp - seq), (0, 0)))
    x_tm = jnp.transpose(x_emb, (1, 0, 2))                          # (Tp, Bp, E)

    # ---- 2) input projection hoisted out of the recurrence ------------------
    pre = matmul_bias(x_tm.reshape(tp * bp, edim), w_ih_p, b_p)
    pre = pre.reshape(tp, bp, 4 * hp)                               # (Tp, Bp, 4Hp)

    # ---- 3) recurrence: grid = (batch blocks ∥, time chunks sequential) -----
    budget = (4 * 2 * (tc * tb * 4 * hp + hp * 4 * hp + tc * tb * hp)
              + 4 * 2 * tb * hp)
    h_seq = pl.pallas_call(
        functools.partial(_lstm_recurrence_kernel, hp=hp, tc=tc),
        out_shape=jax.ShapeDtypeStruct((tp, bp, hp), jnp.float32),
        grid_spec=pltpu.PrefetchScalarGridSpec(
            num_scalar_prefetch=0,
            grid=(bp // tb, tp // tc),
            in_specs=[
                pl.BlockSpec((tc, tb, 4 * hp), lambda bb, s: (s, bb, 0)),
                pl.BlockSpec((hp, 4 * hp), lambda bb, s: (0, 0)),
            ],
            out_specs=pl.BlockSpec((tc, tb, hp), lambda bb, s: (s, bb, 0)),
            scratch_shapes=[
                pltpu.VMEM((tb, hp), jnp.float32),   # h carry
                pltpu.VMEM((tb, hp), jnp.float32),   # c carry
            ],
        ),
        compiler_params=pltpu.CompilerParams(
            dimension_semantics=("parallel", "arbitrary"),
            vmem_limit_bytes=_scoped_vmem_limit(budget),
        ),
    )(pre, w_hh_p)                                                  # (Tp, Bp, Hp)

    # ---- 4) dropout = identity at eval; un-fused vocab projection -----------
    # TODO(synk): training-mode dropout (random Bernoulli mask) not implemented;
    # eval/inference forward treats nn.Dropout as identity.
    h_bt = jnp.transpose(h_seq, (1, 0, 2))[:bsz, :seq]              # (B, T, Hp)
    logits = matmul_bias(h_bt.reshape(bsz * seq, hp), w_fc_p, b_fc)
    return logits.reshape(bsz, seq, vocab)


# ---------------------------------------------------------------------------
# Pure-JAX reference (mirrors the PyTorch forward in eval mode) + params.
# ---------------------------------------------------------------------------
def lstm_language_model_reference(token_ids, params):
    embed, w_ih, w_hh, b = (params["embed"], params["w_ih"],
                            params["w_hh"], params["b"])
    w_fc, b_fc = params["w_fc"], params["b_fc"]
    hdim = w_hh.shape[0]
    x = jnp.take(embed, token_ids, axis=0)                          # (B, T, E)

    def cell(carry, x_t):
        h, c = carry
        gates = x_t @ w_ih + h @ w_hh + b
        i = jax.nn.sigmoid(gates[:, 0 * hdim:1 * hdim])
        f = jax.nn.sigmoid(gates[:, 1 * hdim:2 * hdim])
        g = jnp.tanh(gates[:, 2 * hdim:3 * hdim])
        o = jax.nn.sigmoid(gates[:, 3 * hdim:4 * hdim])
        c = f * c + i * g
        h = o * jnp.tanh(c)
        return (h, c), h

    bsz = token_ids.shape[0]
    init = (jnp.zeros((bsz, hdim), jnp.float32),
            jnp.zeros((bsz, hdim), jnp.float32))
    _, hs = jax.lax.scan(cell, init, jnp.swapaxes(x, 0, 1))
    hs = jnp.swapaxes(hs, 0, 1)                                     # (B, T, H)
    return hs @ w_fc + b_fc


def init_params(key, vocab_size, embed_dim, hidden_dim):
    ks = jax.random.split(key, 7)
    scale = 0.1
    normal = lambda k, s: jax.random.normal(k, s, jnp.float32) * scale
    return {
        "embed": normal(ks[0], (vocab_size, embed_dim)),
        # torch stores weight_ih_l0 as (4H, E); we keep the transposed (E, 4H).
        "w_ih": normal(ks[1], (embed_dim, 4 * hidden_dim)),
        "w_hh": normal(ks[2], (hidden_dim, 4 * hidden_dim)),
        "b": normal(ks[3], (4 * hidden_dim,)) + normal(ks[4], (4 * hidden_dim,)),
        "w_fc": normal(ks[5], (hidden_dim, vocab_size)),
        "b_fc": normal(ks[6], (vocab_size,)),
    }


if __name__ == "__main__":
    # Small shapes consistent with the module (vocab from word2idx, embed=128,
    # hidden=256 — scaled down), deliberately NOT (8,128)-aligned so the
    # internal padding paths are exercised.
    B, T = 3, 10
    VOCAB, EMBED, HIDDEN = 77, 48, 40

    key = jax.random.PRNGKey(0)
    pkey, dkey = jax.random.split(key)
    params = init_params(pkey, VOCAB, EMBED, HIDDEN)
    token_ids = jax.random.randint(dkey, (B, T), 0, VOCAB, dtype=jnp.int32)

    fwd = jax.jit(functools.partial(lstm_language_model_forward, time_chunk=4))
    logits = fwd(token_ids, params)
    jax.block_until_ready(logits)
    assert logits.shape == (B, T, VOCAB), logits.shape

    ref = lstm_language_model_reference(token_ids, params)
    max_err = float(jnp.max(jnp.abs(logits - ref)))
    assert jnp.allclose(logits, ref, atol=1e-3, rtol=1e-3), max_err
    print("KERNEL_OK")
</pallas_src>

<mosaic_0001>
module attributes {stable_mosaic.version = 11 : i64} {
  func.func @_matmul_bias_kernel(%arg0: i32, %arg1: i32, %arg2: memref<96x48xf32, #tpu.memory_space<vmem>>, %arg3: memref<48x512xf32, #tpu.memory_space<vmem>>, %arg4: memref<1x512xf32, #tpu.memory_space<vmem>>, %arg5: memref<96x512xf32, #tpu.memory_space<vmem>>) attributes {dimension_semantics = [#tpu.dimension_semantics<parallel>, #tpu.dimension_semantics<parallel>], iteration_bounds = array<i64: 1, 1>, scalar_prefetch = 0 : i64, scratch_operands = 0 : i64, tpu.core_type = #tpu.core_type<tc>, window_params = [{transform_indices = @transform_0, window_bounds = array<i64: 96, 48>}, {transform_indices = @transform_1, window_bounds = array<i64: 48, 512>}, {transform_indices = @transform_2, window_bounds = array<i64: 1, 512>}, {transform_indices = @transform_3, window_bounds = array<i64: 96, 512>}]} {
    %c0 = arith.constant 0 : index
    %c0_0 = arith.constant 0 : index
    %0 = vector.load %arg2[%c0, %c0_0] : memref<96x48xf32, #tpu.memory_space<vmem>>, vector<96x48xf32>
    %c0_1 = arith.constant 0 : index
    %c0_2 = arith.constant 0 : index
    %1 = vector.load %arg3[%c0_1, %c0_2] : memref<48x512xf32, #tpu.memory_space<vmem>>, vector<48x512xf32>
    %cst = arith.constant dense<0.000000e+00> : vector<96x512xf32>
    %2 = tpu.matmul %0, %1, %cst {dimension_numbers = #tpu.dot_dimension_numbers<[1], [0], [0], [1], [0, 0, 1, 1], [], []>} : vector<96x48xf32>, vector<48x512xf32>, vector<96x512xf32> -> vector<96x512xf32>
    %c0_3 = arith.constant 0 : index
    %c0_4 = arith.constant 0 : index
    %3 = vector.load %arg4[%c0_3, %c0_4] : memref<1x512xf32, #tpu.memory_space<vmem>>, vector<1x512xf32>
    %4 = vector.broadcast %3 : vector<1x512xf32> to vector<96x512xf32>
    %5 = arith.addf %2, %4 : vector<96x512xf32>
    %c0_5 = arith.constant 0 : index
    %c0_6 = arith.constant 0 : index
    %6 = vector.load %arg5[%c0_5, %c0_6] : memref<96x512xf32, #tpu.memory_space<vmem>>, vector<96x512xf32>
    tpu.vector_store %arg5[%c0_5, %c0_6], %5 {strides = array<i32>} : memref<96x512xf32, #tpu.memory_space<vmem>>, vector<96x512xf32>,
    return
  }
  func.func @transform_0(%arg0: i32, %arg1: i32) -> (i32, i32) {
    %c0_i32 = arith.constant 0 : i32
    %c0_i32_0 = arith.constant 0 : i32
    return %arg0, %c0_i32 : i32, i32
  }
  func.func @transform_1(%arg0: i32, %arg1: i32) -> (i32, i32) {
    %c0_i32 = arith.constant 0 : i32
    %c0_i32_0 = arith.constant 0 : i32
    return %c0_i32, %arg1 : i32, i32
  }
  func.func @transform_2(%arg0: i32, %arg1: i32) -> (i32, i32) {
    %c0_i32 = arith.constant 0 : i32
    %c0_i32_0 = arith.constant 0 : i32
    return %c0_i32, %arg1 : i32, i32
  }
  func.func @transform_3(%arg0: i32, %arg1: i32) -> (i32, i32) {
    %c0_i32 = arith.constant 0 : i32
    return %arg0, %arg1 : i32, i32
  }
}

module attributes {stable_mosaic.version = 11 : i64} {
  func.func @_lstm_recurrence_kernel(%arg0: i32, %arg1: i32, %arg2: memref<4x8x512xf32, #tpu.memory_space<vmem>>, %arg3: memref<128x512xf32, #tpu.memory_space<vmem>>, %arg4: memref<4x8x128xf32, #tpu.memory_space<vmem>>, %arg5: memref<8x128xf32, #tpu.memory_space<vmem>>, %arg6: memref<8x128xf32, #tpu.memory_space<vmem>>) attributes {dimension_semantics = [#tpu.dimension_semantics<parallel>, #tpu.dimension_semantics<arbitrary>], iteration_bounds = array<i64: 1, 3>, scalar_prefetch = 0 : i64, scratch_operands = 2 : i64, tpu.core_type = #tpu.core_type<tc>, window_params = [{transform_indices = @transform_0, window_bounds = array<i64: 4, 8, 512>}, {pipeline_mode = #tpu.pipeline_mode<synchronous>, transform_indices = @transform_1, window_bounds = array<i64: 128, 512>}, {transform_indices = @transform_2, window_bounds = array<i64: 4, 8, 128>}]} {
    %c0_i32 = arith.constant 0 : i32
    %0 = arith.cmpi eq, %arg1, %c0_i32 : i32
    %1 = arith.extui %0 : i1 to i32
    %c0_i32_0 = arith.constant 0 : i32
    %2 = arith.cmpi ne, %1, %c0_i32_0 : i32
    scf.if %2 {
      %cst_48 = arith.constant 0.000000e+00 : f32
      %147 = vector.broadcast %cst_48 : f32 to vector<8x128xf32>
      %c0_49 = arith.constant 0 : index
      %c0_50 = arith.constant 0 : index
      %148 = vector.load %arg5[%c0_49, %c0_50] : memref<8x128xf32, #tpu.memory_space<vmem>>, vector<8x128xf32>
      tpu.vector_store %arg5[%c0_49, %c0_50], %147 {strides = array<i32>} : memref<8x128xf32, #tpu.memory_space<vmem>>, vector<8x128xf32>,
      %cst_51 = arith.constant 0.000000e+00 : f32
      %149 = vector.broadcast %cst_51 : f32 to vector<8x128xf32>
      %c0_52 = arith.constant 0 : index
      %c0_53 = arith.constant 0 : index
      %150 = vector.load %arg6[%c0_52, %c0_53] : memref<8x128xf32, #tpu.memory_space<vmem>>, vector<8x128xf32>
      tpu.vector_store %arg6[%c0_52, %c0_53], %149 {strides = array<i32>} : memref<8x128xf32, #tpu.memory_space<vmem>>, vector<8x128xf32>,
    } else {
    }
    %c0 = arith.constant 0 : index
    %c0_1 = arith.constant 0 : index
    %3 = vector.load %arg5[%c0, %c0_1] : memref<8x128xf32, #tpu.memory_space<vmem>>, vector<8x128xf32>
    %c0_2 = arith.constant 0 : index
    %c0_3 = arith.constant 0 : index
    %4 = vector.load %arg6[%c0_2, %c0_3] : memref<8x128xf32, #tpu.memory_space<vmem>>, vector<8x128xf32>
    %c0_i32_4 = arith.constant 0 : i32
    %5 = arith.index_cast %c0_i32_4 : i32 to index
    %c0_5 = arith.constant 0 : index
    %c0_6 = arith.constant 0 : index
    %6 = vector.load %arg2[%5, %c0_5, %c0_6] : memref<4x8x512xf32, #tpu.memory_space<vmem>>, vector<1x8x512xf32>
    %7 = vector.shape_cast %6 : vector<1x8x512xf32> to vector<8x512xf32>
    %c0_7 = arith.constant 0 : index
    %c0_8 = arith.constant 0 : index
    %8 = vector.load %arg3[%c0_7, %c0_8] : memref<128x512xf32, #tpu.memory_space<vmem>>, vector<128x512xf32>
    %cst = arith.constant dense<0.000000e+00> : vector<8x512xf32>
    %9 = tpu.matmul %3, %8, %cst {dimension_numbers = #tpu.dot_dimension_numbers<[1], [0], [0], [1], [0, 0, 1, 1], [], []>} : vector<8x128xf32>, vector<128x512xf32>, vector<8x512xf32> -> vector<8x512xf32>
    %10 = arith.addf %7, %9 : vector<8x512xf32>
    %11 = vector.extract_strided_slice %10 {offsets = [0, 0], sizes = [8, 128], strides = [1, 1]} : vector<8x512xf32> to vector<8x128xf32>
    %12 = arith.negf %11 : vector<8x128xf32>
    %13 = math.exp %12 : vector<8x128xf32>
    %cst_9 = arith.constant 1.000000e+00 : f32
    %14 = vector.broadcast %cst_9 : f32 to vector<8x128xf32>
    %15 = arith.addf %14, %13 : vector<8x128xf32>
    %16 = arith.divf %14, %15 : vector<8x128xf32>
    %17 = vector.extract_strided_slice %10 {offsets = [0, 128], sizes = [8, 128], strides = [1, 1]} : vector<8x512xf32> to vector<8x128xf32>
    %18 = arith.negf %17 : vector<8x128xf32>
    %19 = math.exp %18 : vector<8x128xf32>
    %cst_10 = arith.constant 1.000000e+00 : f32
    %20 = vector.broadcast %cst_10 : f32 to vector<8x128xf32>
    %21 = arith.addf %20, %19 : vector<8x128xf32>
    %22 = arith.divf %20, %21 : vector<8x128xf32>
    %23 = vector.extract_strided_slice %10 {offsets = [0, 256], sizes = [8, 128], strides = [1, 1]} : vector<8x512xf32> to vector<8x128xf32>
    %24 = math.tanh %23 : vector<8x128xf32>
    %25 = vector.extract_strided_slice %10 {offsets = [0, 384], sizes = [8, 128], strides = [1, 1]} : vector<8x512xf32> to vector<8x128xf32>
    %26 = arith.negf %25 : vector<8x128xf32>
    %27 = math.exp %26 : vector<8x128xf32>
    %cst_11 = arith.constant 1.000000e+00 : f32
    %28 = vector.broadcast %cst_11 : f32 to vector<8x128xf32>
    %29 = arith.addf %28, %27 : vector<8x128xf32>
    %30 = arith.divf %28, %29 : vector<8x128xf32>
    %31 = arith.mulf %22, %4 : vector<8x128xf32>
    %32 = arith.mulf %16, %24 : vector<8x128xf32>
    %33 = arith.addf %31, %32 : vector<8x128xf32>
    %34 = math.tanh %33 : vector<8x128xf32>
    %35 = arith.mulf %30, %34 : vector<8x128xf32>
    %36 = arith.index_cast %c0_i32_4 : i32 to index
    %c0_12 = arith.constant 0 : index
    %c0_13 = arith.constant 0 : index
    %37 = vector.load %arg4[%36, %c0_12, %c0_13] : memref<4x8x128xf32, #tpu.memory_space<vmem>>, vector<1x8x128xf32>
    %38 = vector.shape_cast %37 : vector<1x8x128xf32> to vector<8x128xf32>
    %39 = vector.shape_cast %35 : vector<8x128xf32> to vector<1x8x128xf32>
    tpu.vector_store %arg4[%36, %c0_12, %c0_13], %39 {strides = array<i32>} : memref<4x8x128xf32, #tpu.memory_space<vmem>>, vector<1x8x128xf32>,
    %c1_i32 = arith.constant 1 : i32
    %40 = arith.index_cast %c1_i32 : i32 to index
    %c0_14 = arith.constant 0 : index
    %c0_15 = arith.constant 0 : index
    %41 = vector.load %arg2[%40, %c0_14, %c0_15] : memref<4x8x512xf32, #tpu.memory_space<vmem>>, vector<1x8x512xf32>
    %42 = vector.shape_cast %41 : vector<1x8x512xf32> to vector<8x512xf32>
    %c0_16 = arith.constant 0 : index
    %c0_17 = arith.constant 0 : index
    %43 = vector.load %arg3[%c0_16, %c0_17] : memref<128x512xf32, #tpu.memory_space<vmem>>, vector<128x512xf32>
    %cst_18 = arith.constant dense<0.000000e+00> : vector<8x512xf32>
    %44 = tpu.matmul %35, %43, %cst_18 {dimension_numbers = #tpu.dot_dimension_numbers<[1], [0], [0], [1], [0, 0, 1, 1], [], []>} : vector<8x128xf32>, vector<128x512xf32>, vector<8x512xf32> -> vector<8x512xf32>
    %45 = arith.addf %42, %44 : vector<8x512xf32>
    %46 = vector.extract_strided_slice %45 {offsets = [0, 0], sizes = [8, 128], strides = [1, 1]} : vector<8x512xf32> to vector<8x128xf32>
    %47 = arith.negf %46 : vector<8x128xf32>
    %48 = math.exp %47 : vector<8x128xf32>
    %cst_19 = arith.constant 1.000000e+00 : f32
    %49 = vector.broadcast %cst_19 : f32 to vector<8x128xf32>
    %50 = arith.addf %49, %48 : vector<8x128xf32>
    %51 = arith.divf %49, %50 : vector<8x128xf32>
    %52 = vector.extract_strided_slice %45 {offsets = [0, 128], sizes = [8, 128], strides = [1, 1]} : vector<8x512xf32> to vector<8x128xf32>
    %53 = arith.negf %52 : vector<8x128xf32>
    %54 = math.exp %53 : vector<8x128xf32>
    %cst_20 = arith.constant 1.000000e+00 : f32
    %55 = vector.broadcast %cst_20 : f32 to vector<8x128xf32>
    %56 = arith.addf %55, %54 : vector<8x128xf32>
    %57 = arith.divf %55, %56 : vector<8x128xf32>
    %58 = vector.extract_strided_slice %45 {offsets = [0, 256], sizes = [8, 128], strides = [1, 1]} : vector<8x512xf32> to vector<8x128xf32>
    %59 = math.tanh %58 : vector<8x128xf32>
    %60 = vector.extract_strided_slice %45 {offsets = [0, 384], sizes = [8, 128], strides = [1, 1]} : vector<8x512xf32> to vector<8x128xf32>
    %61 = arith.negf %60 : vector<8x128xf32>
    %62 = math.exp %61 : vector<8x128xf32>
    %cst_21 = arith.constant 1.000000e+00 : f32
    %63 = vector.broadcast %cst_21 : f32 to vector<8x128xf32>
    %64 = arith.addf %63, %62 : vector<8x128xf32>
    %65 = arith.divf %63, %64 : vector<8x128xf32>
    %66 = arith.mulf %57, %33 : vector<8x128xf32>
    %67 = arith.mulf %51, %59 : vector<8x128xf32>
    %68 = arith.addf %66, %67 : vector<8x128xf32>
    %69 = math.tanh %68 : vector<8x128xf32>
    %70 = arith.mulf %65, %69 : vector<8x128xf32>
    %71 = arith.index_cast %c1_i32 : i32 to index
    %c0_22 = arith.constant 0 : index
    %c0_23 = arith.constant 0 : index
    %72 = vector.load %arg4[%71, %c0_22, %c0_23] : memref<4x8x128xf32, #tpu.memory_space<vmem>>, vector<1x8x128xf32>
    %73 = vector.shape_cast %72 : vector<1x8x128xf32> to vector<8x128xf32>
    %74 = vector.shape_cast %70 : vector<8x128xf32> to vector<1x8x128xf32>
    tpu.vector_store %arg4[%71, %c0_22, %c0_23], %74 {strides = array<i32>} : memref<4x8x128xf32, #tpu.memory_space<vmem>>, vector<1x8x128xf32>,
    %c2_i32 = arith.constant 2 : i32
    %75 = arith.index_cast %c2_i32 : i32 to index
    %c0_24 = arith.constant 0 : index
    %c0_25 = arith.constant 0 : index
    %76 = vector.load %arg2[%75, %c0_24, %c0_25] : memref<4x8x512xf32, #tpu.memory_space<vmem>>, vector<1x8x512xf32>
    %77 = vector.shape_cast %76 : vector<1x8x512xf32> to vector<8x512xf32>
    %c0_26 = arith.constant 0 : index
    %c0_27 = arith.constant 0 : index
    %78 = vector.load %arg3[%c0_26, %c0_27] : memref<128x512xf32, #tpu.memory_space<vmem>>, vector<128x512xf32>
    %cst_28 = arith.constant dense<0.000000e+00> : vector<8x512xf32>
    %79 = tpu.matmul %70, %78, %cst_28 {dimension_numbers = #tpu.dot_dimension_numbers<[1], [0], [0], [1], [0, 0, 1, 1], [], []>} : vector<8x128xf32>, vector<128x512xf32>, vector<8x512xf32> -> vector<8x512xf32>
    %80 = arith.addf %77, %79 : vector<8x512xf32>
    %81 = vector.extract_strided_slice %80 {offsets = [0, 0], sizes = [8, 128], strides = [1, 1]} : vector<8x512xf32> to vector<8x128xf32>
    %82 = arith.negf %81 : vector<8x128xf32>
    %83 = math.exp %82 : vector<8x128xf32>
    %cst_29 = arith.constant 1.000000e+00 : f32
    %84 = vector.broadcast %cst_29 : f32 to vector<8x128xf32>
    %85 = arith.addf %84, %83 : vector<8x128xf32>
    %86 = arith.divf %84, %85 : vector<8x128xf32>
    %87 = vector.extract_strided_slice %80 {offsets = [0, 128], sizes = [8, 128], strides = [1, 1]} : vector<8x512xf32> to vector<8x128xf32>
    %88 = arith.negf %87 : vector<8x128xf32>
    %89 = math.exp %88 : vector<8x128xf32>
    %cst_30 = arith.constant 1.000000e+00 : f32
    %90 = vector.broadcast %cst_30 : f32 to vector<8x128xf32>
    %91 = arith.addf %90, %89 : vector<8x128xf32>
    %92 = arith.divf %90, %91 : vector<8x128xf32>
    %93 = vector.extract_strided_slice %80 {offsets = [0, 256], sizes = [8, 128], strides = [1, 1]} : vector<8x512xf32> to vector<8x128xf32>
    %94 = math.tanh %93 : vector<8x128xf32>
    %95 = vector.extract_strided_slice %80 {offsets = [0, 384], sizes = [8, 128], strides = [1, 1]} : vector<8x512xf32> to vector<8x128xf32>
    %96 = arith.negf %95 : vector<8x128xf32>
    %97 = math.exp %96 : vector<8x128xf32>
    %cst_31 = arith.constant 1.000000e+00 : f32
    %98 = vector.broadcast %cst_31 : f32 to vector<8x128xf32>
    %99 = arith.addf %98, %97 : vector<8x128xf32>
    %100 = arith.divf %98, %99 : vector<8x128xf32>
    %101 = arith.mulf %92, %68 : vector<8x128xf32>
    %102 = arith.mulf %86, %94 : vector<8x128xf32>
    %103 = arith.addf %101, %102 : vector<8x128xf32>
    %104 = math.tanh %103 : vector<8x128xf32>
    %105 = arith.mulf %100, %104 : vector<8x128xf32>
    %106 = arith.index_cast %c2_i32 : i32 to index
    %c0_32 = arith.constant 0 : index
    %c0_33 = arith.constant 0 : index
    %107 = vector.load %arg4[%106, %c0_32, %c0_33] : memref<4x8x128xf32, #tpu.memory_space<vmem>>, vector<1x8x128xf32>
    %108 = vector.shape_cast %107 : vector<1x8x128xf32> to vector<8x128xf32>
    %109 = vector.shape_cast %105 : vector<8x128xf32> to vector<1x8x128xf32>
    tpu.vector_store %arg4[%106, %c0_32, %c0_33], %109 {strides = array<i32>} : memref<4x8x128xf32, #tpu.memory_space<vmem>>, vector<1x8x128xf32>,
    %c3_i32 = arith.constant 3 : i32
    %110 = arith.index_cast %c3_i32 : i32 to index
    %c0_34 = arith.constant 0 : index
    %c0_35 = arith.constant 0 : index
    %111 = vector.load %arg2[%110, %c0_34, %c0_35] : memref<4x8x512xf32, #tpu.memory_space<vmem>>, vector<1x8x512xf32>
    %112 = vector.shape_cast %111 : vector<1x8x512xf32> to vector<8x512xf32>
    %c0_36 = arith.constant 0 : index
    %c0_37 = arith.constant 0 : index
    %113 = vector.load %arg3[%c0_36, %c0_37] : memref<128x512xf32, #tpu.memory_space<vmem>>, vector<128x512xf32>
    %cst_38 = arith.constant dense<0.000000e+00> : vector<8x512xf32>
    %114 = tpu.matmul %105, %113, %cst_38 {dimension_numbers = #tpu.dot_dimension_numbers<[1], [0], [0], [1], [0, 0, 1, 1], [], []>} : vector<8x128xf32>, vector<128x512xf32>, vector<8x512xf32> -> vector<8x512xf32>
    %115 = arith.addf %112, %114 : vector<8x512xf32>
    %116 = vector.extract_strided_slice %115 {offsets = [0, 0], sizes = [8, 128], strides = [1, 1]} : vector<8x512xf32> to vector<8x128xf32>
    %117 = arith.negf %116 : vector<8x128xf32>
    %118 = math.exp %117 : vector<8x128xf32>
    %cst_39 = arith.constant 1.000000e+00 : f32
    %119 = vector.broadcast %cst_39 : f32 to vector<8x128xf32>
    %120 = arith.addf %119, %118 : vector<8x128xf32>
    %121 = arith.divf %119, %120 : vector<8x128xf32>
    %122 = vector.extract_strided_slice %115 {offsets = [0, 128], sizes = [8, 128], strides = [1, 1]} : vector<8x512xf32> to vector<8x128xf32>
    %123 = arith.negf %122 : vector<8x128xf32>
    %124 = math.exp %123 : vector<8x128xf32>
    %cst_40 = arith.constant 1.000000e+00 : f32
    %125 = vector.broadcast %cst_40 : f32 to vector<8x128xf32>
    %126 = arith.addf %125, %124 : vector<8x128xf32>
    %127 = arith.divf %125, %126 : vector<8x128xf32>
    %128 = vector.extract_strided_slice %115 {offsets = [0, 256], sizes = [8, 128], strides = [1, 1]} : vector<8x512xf32> to vector<8x128xf32>
    %129 = math.tanh %128 : vector<8x128xf32>
    %130 = vector.extract_strided_slice %115 {offsets = [0, 384], sizes = [8, 128], strides = [1, 1]} : vector<8x512xf32> to vector<8x128xf32>
    %131 = arith.negf %130 : vector<8x128xf32>
    %132 = math.exp %131 : vector<8x128xf32>
    %cst_41 = arith.constant 1.000000e+00 : f32
    %133 = vector.broadcast %cst_41 : f32 to vector<8x128xf32>
    %134 = arith.addf %133, %132 : vector<8x128xf32>
    %135 = arith.divf %133, %134 : vector<8x128xf32>
    %136 = arith.mulf %127, %103 : vector<8x128xf32>
    %137 = arith.mulf %121, %129 : vector<8x128xf32>
    %138 = arith.addf %136, %137 : vector<8x128xf32>
    %139 = math.tanh %138 : vector<8x128xf32>
    %140 = arith.mulf %135, %139 : vector<8x128xf32>
    %141 = arith.index_cast %c3_i32 : i32 to index
    %c0_42 = arith.constant 0 : index
    %c0_43 = arith.constant 0 : index
    %142 = vector.load %arg4[%141, %c0_42, %c0_43] : memref<4x8x128xf32, #tpu.memory_space<vmem>>, vector<1x8x128xf32>
    %143 = vector.shape_cast %142 : vector<1x8x128xf32> to vector<8x128xf32>
    %144 = vector.shape_cast %140 : vector<8x128xf32> to vector<1x8x128xf32>
    tpu.vector_store %arg4[%141, %c0_42, %c0_43], %144 {strides = array<i32>} : memref<4x8x128xf32, #tpu.memory_space<vmem>>, vector<1x8x128xf32>,
    %c4_i32 = arith.constant 4 : i32
    %c0_44 = arith.constant 0 : index
    %c0_45 = arith.constant 0 : index
    %145 = vector.load %arg5[%c0_44, %c0_45] : memref<8x128xf32, #tpu.memory_space<vmem>>, vector<8x128xf32>
    tpu.vector_store %arg5[%c0_44, %c0_45], %140 {strides = array<i32>} : memref<8x128xf32, #tpu.memory_space<vmem>>, vector<8x128xf32>,
    %c0_46 = arith.constant 0 : index
    %c0_47 = arith.constant 0 : index
    %146 = vector.load %arg6[%c0_46, %c0_47] : memref<8x128xf32, #tpu.memory_space<vmem>>, vector<8x128xf32>
    tpu.vector_store %arg6[%c0_46, %c0_47], %138 {strides = array<i32>} : memref<8x128xf32, #tpu.memory_space<vmem>>, vector<8x128xf32>,
    return
  }
  func.func @transform_0(%arg0: i32, %arg1: i32) -> (i32, i32, i32) {
    %c0_i32 = arith.constant 0 : i32
    %c0_i32_0 = arith.constant 0 : i32
    return %arg1, %arg0, %c0_i32 : i32, i32, i32
  }
  func.func @transform_1(%arg0: i32, %arg1: i32) -> (i32, i32) {
    %c0_i32 = arith.constant 0 : i32
    %c0_i32_0 = arith.constant 0 : i32
    %c0_i32_1 = arith.constant 0 : i32
    return %c0_i32, %c0_i32_0 : i32, i32
  }
  func.func @transform_2(%arg0: i32, %arg1: i32) -> (i32, i32, i32) {
    %c0_i32 = arith.constant 0 : i32
    %c0_i32_0 = arith.constant 0 : i32
    return %arg1, %arg0, %c0_i32 : i32, i32, i32
  }
}

module attributes {stable_mosaic.version = 11 : i64} {
  func.func @_matmul_bias_kernel(%arg0: i32, %arg1: i32, %arg2: memref<32x128xf32, #tpu.memory_space<vmem>>, %arg3: memref<128x128xf32, #tpu.memory_space<vmem>>, %arg4: memref<1x128xf32, #tpu.memory_space<vmem>>, %arg5: memref<32x128xf32, #tpu.memory_space<vmem>>) attributes {dimension_semantics = [#tpu.dimension_semantics<parallel>, #tpu.dimension_semantics<parallel>], iteration_bounds = array<i64: 1, 1>, scalar_prefetch = 0 : i64, scratch_operands = 0 : i64, tpu.core_type = #tpu.core_type<tc>, window_params = [{transform_indices = @transform_0, window_bounds = array<i64: 32, 128>}, {transform_indices = @transform_1, window_bounds = array<i64: 128, 128>}, {transform_indices = @transform_2, window_bounds = array<i64: 1, 128>}, {transform_indices = @transform_3, window_bounds = array<i64: 32, 128>}]} {
    %c0 = arith.constant 0 : index
    %c0_0 = arith.constant 0 : index
    %0 = vector.load %arg2[%c0, %c0_0] : memref<32x128xf32, #tpu.memory_space<vmem>>, vector<32x128xf32>
    %c0_1 = arith.constant 0 : index
    %c0_2 = arith.constant 0 : index
    %1 = vector.load %arg3[%c0_1, %c0_2] : memref<128x128xf32, #tpu.memory_space<vmem>>, vector<128x128xf32>
    %cst = arith.constant dense<0.000000e+00> : vector<32x128xf32>
    %2 = tpu.matmul %0, %1, %cst {dimension_numbers = #tpu.dot_dimension_numbers<[1], [0], [0], [1], [0, 0, 1, 1], [], []>} : vector<32x128xf32>, vector<128x128xf32>, vector<32x128xf32> -> vector<32x128xf32>
    %c0_3 = arith.constant 0 : index
    %c0_4 = arith.constant 0 : index
    %3 = vector.load %arg4[%c0_3, %c0_4] : memref<1x128xf32, #tpu.memory_space<vmem>>, vector<1x128xf32>
    %4 = vector.broadcast %3 : vector<1x128xf32> to vector<32x128xf32>
    %5 = arith.addf %2, %4 : vector<32x128xf32>
    %c0_5 = arith.constant 0 : index
    %c0_6 = arith.constant 0 : index
    %6 = vector.load %arg5[%c0_5, %c0_6] : memref<32x128xf32, #tpu.memory_space<vmem>>, vector<32x128xf32>
    tpu.vector_store %arg5[%c0_5, %c0_6], %5 {strides = array<i32>} : memref<32x128xf32, #tpu.memory_space<vmem>>, vector<32x128xf32>,
    return
  }
  func.func @transform_0(%arg0: i32, %arg1: i32) -> (i32, i32) {
    %c0_i32 = arith.constant 0 : i32
    %c0_i32_0 = arith.constant 0 : i32
    return %arg0, %c0_i32 : i32, i32
  }
  func.func @transform_1(%arg0: i32, %arg1: i32) -> (i32, i32) {
    %c0_i32 = arith.constant 0 : i32
    %c0_i32_0 = arith.constant 0 : i32
    return %c0_i32, %arg1 : i32, i32
  }
  func.func @transform_2(%arg0: i32, %arg1: i32) -> (i32, i32) {
    %c0_i32 = arith.constant 0 : i32
    %c0_i32_0 = arith.constant 0 : i32
    return %c0_i32, %arg1 : i32, i32
  }
  func.func @transform_3(%arg0: i32, %arg1: i32) -> (i32, i32) {
    %c0_i32 = arith.constant 0 : i32
    return %arg0, %arg1 : i32, i32
  }
}

</mosaic_0001>

<llo_original>
// kernel: lstm_language_model_forward.5
$region0: #{lstm_language_model_forward.5}
  #allocation0 [shape = 'u32[]', space=smem, size = 0x4, offset = 0x4, fixed_abs, tag = 'smem constant byte address 0x4 - core index']
  #allocation1 [shape = 'u32[144,128]{1,0:T(1,128)}', space=vmem, size = 0x12000, scoped, tag = 'internal scratch']
  %s0 = inlined_call_operand.vmem [shape: f32[32,128], index: 0, kind: input, shape index: {}]
  %s1 = inlined_call_operand.vmem [shape: f32[128,128], index: 1, kind: input, shape index: {}]
  %s2 = inlined_call_operand.vmem [shape: f32[1,128], index: 2, kind: input, shape index: {}]
  %s3 = inlined_call_operand.vmem [shape: f32[32,128], index: 3, kind: output, shape index: {}]
  %s4 = sld [smem:[#allocation0]]
  $region22: #{lstm_language_model_forward.5} parent=0
    _
  %s6 = ssub.s32 1, %s4
  %s7 = scalar_select 0, %s6, %s4
  // Predicated region
  $region2: #{lstm_language_model_forward.5} parent=0 // pred_check
    _
  $region3: #{lstm_language_model_forward.5} parent=0 // pred_check_branch
    %9 = sbr.rel (0) target = $region5
  $region4: #{lstm_language_model_forward.5} parent=0 // pred_region
    _
  $region5: #{lstm_language_model_forward.5} parent=0 // pred_fallthru
    _
  // Predicated region
  $region6: #{lstm_language_model_forward.5} parent=0 // pred_check
    _
  $region7: #{lstm_language_model_forward.5} parent=0 // pred_check_branch
    %11 = sbr.rel (0) target = $region9
  $region8: #{lstm_language_model_forward.5} parent=0 // pred_region
    _
  $region9: #{lstm_language_model_forward.5} parent=0 // pred_fallthru
    _
  // Predicated region
  $region10: #{lstm_language_model_forward.5} parent=0 // pred_check
    _
  $region11: #{lstm_language_model_forward.5} parent=0 // pred_check_branch
    %13 = sbr.rel (0) target = $region13
  $region12: #{lstm_language_model_forward.5} parent=0 // pred_region
    _
  $region13: #{lstm_language_model_forward.5} parent=0 // pred_fallthru
    _
  %v14 = vld [vmem:[%s0] sm:$0xff]
  %v15 = vld [vmem:[%s0 + $0x8] sm:$0xff]
  %v16 = vld [vmem:[%s0 + $0x10] sm:$0xff]
  %v17 = vld [vmem:[%s0 + $0x18] sm:$0xff]
  %v18 = vld [vmem:[%s1] sm:$0xff]
  %v19 = vld [vmem:[%s1 + $0x8] sm:$0xff]
  %v20 = vld [vmem:[%s1 + $0x10] sm:$0xff]
  %v21 = vld [vmem:[%s1 + $0x18] sm:$0xff]
  %v22 = vld [vmem:[%s1 + $0x20] sm:$0xff]
  %v23 = vld [vmem:[%s1 + $0x28] sm:$0xff]
  %v24 = vld [vmem:[%s1 + $0x30] sm:$0xff]
  %v25 = vld [vmem:[%s1 + $0x38] sm:$0xff]
  %v26 = vld [vmem:[%s1 + $0x40] sm:$0xff]
  %v27 = vld [vmem:[%s1 + $0x48] sm:$0xff]
  %v28 = vld [vmem:[%s1 + $0x50] sm:$0xff]
  %v29 = vld [vmem:[%s1 + $0x58] sm:$0xff]
  %v30 = vld [vmem:[%s1 + $0x60] sm:$0xff]
  %v31 = vld [vmem:[%s1 + $0x68] sm:$0xff]
  %v32 = vld [vmem:[%s1 + $0x70] sm:$0xff]
  %v33 = vld [vmem:[%s1 + $0x78] sm:$0xff]
  %v34 = vld [vmem:[%s2] sm:$0x1]
  %v36 = vlaneseq
  %v37 = vshrl.u32 %v36, 7
  %v38 = vsub.s32 0, %v37
  %v39 = vrot.slane %v34, %v38
  %41 = vmatprep.subr.mxu0 0.0
  %42 = vmatpush1.msra.mxu0 %v18
  %43 = vmatprep.subr.mxu0 0.0
  %44 = vmatpush1.msra.mxu0 %v19
  %45 = vmatprep.subr.mxu0 0.0
  %46 = vmatpush1.msra.mxu0 %v20
  %47 = vmatprep.subr.mxu0 0.0
  %48 = vmatpush1.msra.mxu0 %v21
  %49 = vmatprep.subr.mxu0 0.0
  %50 = vmatpush1.msra.mxu0 %v22
  %51 = vmatprep.subr.mxu0 0.0
  %52 = vmatpush1.msra.mxu0 %v23
  %53 = vmatprep.subr.mxu0 0.0
  %54 = vmatpush1.msra.mxu0 %v24
  %55 = vmatprep.subr.mxu0 0.0
  %56 = vmatpush1.msra.mxu0 %v25
  %57 = vmatprep.subr.mxu0 0.0
  %58 = vmatpush1.msra.mxu0 %v26
  %59 = vmatprep.subr.mxu0 0.0
  %60 = vmatpush1.msra.mxu0 %v27
  %61 = vmatprep.subr.mxu0 0.0
  %62 = vmatpush1.msra.mxu0 %v28
  %63 = vmatprep.subr.mxu0 0.0
  %64 = vmatpush1.msra.mxu0 %v29
  %65 = vmatprep.subr.mxu0 0.0
  %66 = vmatpush1.msra.mxu0 %v30
  %67 = vmatprep.subr.mxu0 0.0
  %68 = vmatpush1.msra.mxu0 %v31
  %69 = vmatprep.subr.mxu0 0.0
  %70 = vmatpush1.msra.mxu0 %v32
  %71 = vmatprep.subr.mxu0 0.0
  %72 = vmatpush1.msra.mxu0 %v33
  %73 = vmatprep.subr.mxu0 0.0
  %74 = vmatpush1.msra.mxu0 0.0
  %75 = vmatprep.subr.mxu0 0.0
  %76 = vmatpush1.msra.mxu0 0.0
  %77 = vmatprep.subr.mxu0 0.0
  %78 = vmatpush1.msra.mxu0 0.0
  %79 = vmatprep.subr.mxu0 0.0
  %80 = vmatpush1.msra.mxu0 0.0
  %81 = vmatprep.subr.mxu0 0.0
  %82 = vmatpush1.msra.mxu0 0.0
  %83 = vmatprep.subr.mxu0 0.0
  %84 = vmatpush1.msra.mxu0 0.0
  %85 = vmatprep.subr.mxu0 0.0
  %86 = vmatpush1.msra.mxu0 0.0
  %87 = vmatprep.subr.mxu0 0.0
  %88 = vmatpush1.msra.mxu0 0.0
  %89 = vmatprep.subr.mxu0 0.0
  %90 = vmatpush1.msra.mxu0 0.0
  %91 = vmatprep.subr.mxu0 0.0
  %92 = vmatpush1.msra.mxu0 0.0
  %93 = vmatprep.subr.mxu0 0.0
  %94 = vmatpush1.msra.mxu0 0.0
  %95 = vmatprep.subr.mxu0 0.0
  %96 = vmatpush1.msra.mxu0 0.0
  %97 = vmatprep.subr.mxu0 0.0
  %98 = vmatpush1.msra.mxu0 0.0
  %99 = vmatprep.subr.mxu0 0.0
  %100 = vmatpush1.msra.mxu0 0.0
  %101 = vmatprep.subr.mxu0 0.0
  %102 = vmatpush1.msra.mxu0 0.0
  %103 = vmatprep.subr.mxu0 0.0
  %104 = vmatpush1.msra.mxu0 0.0
  %105 = vmatprep.mubr.f32.mxu0 0.0
  %106 = vmatmul.mubr.f32.gmra.mrb[0].mxu0 %v14
  %v107 = vpop.f32.mrb[0].mxu0
  %v108 = vadd.f32 %v39, %v107
  %v109 = vpop.f32.mrb[0].mxu0
  %110 = vmatprep.mubr.f32.mxu0 0.0
  %111 = vmatmul.mubr.f32.gmra.mrb[0].mxu0 %v15
  %v112 = vpop.f32.mrb[0].mxu0
  %v113 = vadd.f32 %v39, %v112
  %v114 = vpop.f32.mrb[0].mxu0
  %115 = vmatprep.mubr.f32.mxu0 0.0
  %116 = vmatmul.mubr.f32.gmra.mrb[0].mxu0 %v16
  %v117 = vpop.f32.mrb[0].mxu0
  %v118 = vadd.f32 %v39, %v117
  %v119 = vpop.f32.mrb[0].mxu0
  %120 = vmatprep.mubr.f32.mxu0 0.0
  %121 = vmatmul.mubr.f32.gmra.mrb[0].mxu0 %v17
  %v122 = vpop.f32.mrb[0].mxu0
  %v123 = vadd.f32 %v39, %v122
  %v124 = vpop.f32.mrb[0].mxu0
  %125 = vdwg.mxu0
  %126 = vst [vmem:[%s3] sm:$0xff] %v108
  %127 = vst [vmem:[%s3 + $0x8] sm:$0xff] %v113
  %128 = vst [vmem:[%s3 + $0x10] sm:$0xff] %v118
  %129 = vst [vmem:[%s3 + $0x18] sm:$0xff] %v123
  // Predicated region
  $region14: #{lstm_language_model_forward.5} parent=0 // pred_check
    _
  $region15: #{lstm_language_model_forward.5} parent=0 // pred_check_branch
    %131 = sbr.rel (0) target = $region17
  $region16: #{lstm_language_model_forward.5} parent=0 // pred_region
    _
  $region17: #{lstm_language_model_forward.5} parent=0 // pred_fallthru
    _
  // Predicated region
  $region18: #{lstm_language_model_forward.5} parent=0 // pred_check
    _
  $region19: #{lstm_language_model_forward.5} parent=0 // pred_check_branch
    %133 = sbr.rel (0) target = $region21
  $region20: #{lstm_language_model_forward.5} parent=0 // pred_region
    _
  $region21: #{lstm_language_model_forward.5} parent=0 // pred_fallthru
    _

// kernel: lstm_language_model_forward.3
$region0: #{lstm_language_model_forward.3}
  #allocation0 [shape = 'u32[]', space=smem, size = 0x4, offset = 0x4, fixed_abs, tag = 'smem constant byte address 0x4 - core index']
  #allocation1 [shape = 'u32[144,128]{1,0:T(1,128)}', space=vmem, size = 0x12000, scoped, tag = 'internal scratch']
  %s0 = inlined_call_operand.vmem [shape: f32[96,48], index: 0, kind: input, shape index: {}]
  %s1 = inlined_call_operand.vmem [shape: f32[48,512], index: 1, kind: input, shape index: {}]
  %s2 = inlined_call_operand.vmem [shape: f32[1,512], index: 2, kind: input, shape index: {}]
  %s3 = inlined_call_operand.vmem [shape: f32[96,512], index: 3, kind: output, shape index: {}]
  %s4 = sld [smem:[#allocation0]]
  $region22: #{lstm_language_model_forward.3} parent=0
    _
  %s6 = ssub.s32 1, %s4
  %s7 = scalar_select 0, %s6, %s4
  // Predicated region
  $region2: #{lstm_language_model_forward.3} parent=0 // pred_check
    _
  $region3: #{lstm_language_model_forward.3} parent=0 // pred_check_branch
    %9 = sbr.rel (0) target = $region5
  $region4: #{lstm_language_model_forward.3} parent=0 // pred_region
    _
  $region5: #{lstm_language_model_forward.3} parent=0 // pred_fallthru
    _
  // Predicated region
  $region6: #{lstm_language_model_forward.3} parent=0 // pred_check
    _
  $region7: #{lstm_language_model_forward.3} parent=0 // pred_check_branch
    %11 = sbr.rel (0) target = $region9
  $region8: #{lstm_language_model_forward.3} parent=0 // pred_region
    _
  $region9: #{lstm_language_model_forward.3} parent=0 // pred_fallthru
    _
  // Predicated region
  $region10: #{lstm_language_model_forward.3} parent=0 // pred_check
    _
  $region11: #{lstm_language_model_forward.3} parent=0 // pred_check_branch
    %13 = sbr.rel (0) target = $region13
  $region12: #{lstm_language_model_forward.3} parent=0 // pred_region
    _
  $region13: #{lstm_language_model_forward.3} parent=0 // pred_fallthru
    _
  %v14 = vld [vmem:[%s0] sm:$0xff]
  %v15 = vld [vmem:[%s0 + $0x8] sm:$0xff]
  %v16 = vld [vmem:[%s0 + $0x10] sm:$0xff]
  %v17 = vld [vmem:[%s0 + $0x18] sm:$0xff]
  %v18 = vld [vmem:[%s0 + $0x20] sm:$0xff]
  %v19 = vld [vmem:[%s0 + $0x28] sm:$0xff]
  %v20 = vld [vmem:[%s0 + $0x30] sm:$0xff]
  %v21 = vld [vmem:[%s0 + $0x38] sm:$0xff]
  %v22 = vld [vmem:[%s0 + $0x40] sm:$0xff]
  %v23 = vld [vmem:[%s0 + $0x48] sm:$0xff]
  %v24 = vld [vmem:[%s0 + $0x50] sm:$0xff]
  %v25 = vld [vmem:[%s0 + $0x58] sm:$0xff]
  %v26 = vld [vmem:[%s1] sm:$0xff]
  %v27 = vld [vmem:[%s1 + $0x8] sm:$0xff]
  %v28 = vld [vmem:[%s1 + $0x10] sm:$0xff]
  %v29 = vld [vmem:[%s1 + $0x18] sm:$0xff]
  %v30 = vld [vmem:[%s1 + $0x20] sm:$0xff]
  %v31 = vld [vmem:[%s1 + $0x28] sm:$0xff]
  %v32 = vld [vmem:[%s1 + $0x30] sm:$0xff]
  %v33 = vld [vmem:[%s1 + $0x38] sm:$0xff]
  %v34 = vld [vmem:[%s1 + $0x40] sm:$0xff]
  %v35 = vld [vmem:[%s1 + $0x48] sm:$0xff]
  %v36 = vld [vmem:[%s1 + $0x50] sm:$0xff]
  %v37 = vld [vmem:[%s1 + $0x58] sm:$0xff]
  %v38 = vld [vmem:[%s1 + $0x60] sm:$0xff]
  %v39 = vld [vmem:[%s1 + $0x68] sm:$0xff]
  %v40 = vld [vmem:[%s1 + $0x70] sm:$0xff]
  %v41 = vld [vmem:[%s1 + $0x78] sm:$0xff]
  %v42 = vld [vmem:[%s1 + $0x80] sm:$0xff]
  %v43 = vld [vmem:[%s1 + $0x88] sm:$0xff]
  %v44 = vld [vmem:[%s1 + $0x90] sm:$0xff]
  %v45 = vld [vmem:[%s1 + $0x98] sm:$0xff]
  %v46 = vld [vmem:[%s1 + $0xa0] sm:$0xff]
  %v47 = vld [vmem:[%s1 + $0xa8] sm:$0xff]
  %v48 = vld [vmem:[%s1 + $0xb0] sm:$0xff]
  %v49 = vld [vmem:[%s1 + $0xb8] sm:$0xff]
  %v50 = vld [vmem:[%s2] sm:$0xf]
  %v52 = vlaneseq
  %v53 = vshrl.u32 %v52, 7
  %v54 = vsub.s32 0, %v53
  %v55 = vrot.slane %v50, %v54
  %v56 = vlaneseq
  %v57 = vshrl.u32 %v56, 7
  %v58 = vsub.s32 1, %v57
  %v59 = vrot.slane %v50, %v58
  %v60 = vlaneseq
  %v61 = vshrl.u32 %v60, 7
  %v62 = vsub.s32 2, %v61
  %v63 = vrot.slane %v50, %v62
  %v64 = vlaneseq
  %v65 = vshrl.u32 %v64, 7
  %v66 = vsub.s32 3, %v65
  %v67 = vrot.slane %v50, %v66
  %vm72 = vcmask 392192
  %v74 = vsel %vm72, %v14, 0
  %v77 = vsel %vm72, %v15, 0
  %v80 = vsel %vm72, %v16, 0
  %v83 = vsel %vm72, %v17, 0
  %v86 = vsel %vm72, %v18, 0
  %v89 = vsel %vm72, %v19, 0
  %v92 = vsel %vm72, %v20, 0
  %v95 = vsel %vm72, %v21, 0
  %v98 = vsel %vm72, %v22, 0
  %v101 = vsel %vm72, %v23, 0
  %v104 = vsel %vm72, %v24, 0
  %v107 = vsel %vm72, %v25, 0
  %109 = vmatprep.subr.mxu0 %v27
  %110 = vmatpush1.msra.mxu0 %v26
  %111 = vmatprep.subr.mxu0 %v31
  %112 = vmatpush1.msra.mxu0 %v30
  %113 = vmatprep.subr.mxu0 %v35
  %114 = vmatpush1.msra.mxu0 %v34
  %115 = vmatprep.subr.mxu0 %v39
  %116 = vmatpush1.msra.mxu0 %v38
  %117 = vmatprep.subr.mxu0 %v43
  %118 = vmatpush1.msra.mxu0 %v42
  %119 = vmatprep.subr.mxu0 %v47
  %120 = vmatpush1.msra.mxu0 %v46
  %121 = vmatprep.subr.mxu0 0.0
  %122 = vmatpush1.msra.mxu0 0.0
  %123 = vmatprep.subr.mxu0 0.0
  %124 = vmatpush1.msra.mxu0 0.0
  %125 = vmatprep.subr.mxu0 0.0
  %126 = vmatpush1.msra.mxu0 0.0
  %127 = vmatprep.subr.mxu0 0.0
  %128 = vmatpush1.msra.mxu0 0.0
  %129 = vmatprep.subr.mxu0 0.0
  %130 = vmatpush1.msra.mxu0 0.0
  %131 = vmatprep.subr.mxu0 0.0
  %132 = vmatpush1.msra.mxu0 0.0
  %133 = vmatprep.subr.mxu0 0.0
  %134 = vmatpush1.msra.mxu0 0.0
  %135 = vmatprep.subr.mxu0 0.0
  %136 = vmatpush1.msra.mxu0 0.0
  %137 = vmatprep.subr.mxu0 0.0
  %138 = vmatpush1.msra.mxu0 0.0
  %139 = vmatprep.subr.mxu0 0.0
  %140 = vmatpush1.msra.mxu0 0.0
  %141 = vmatprep.subr.mxu0 0.0
  %142 = vmatpush1.msra.mxu0 0.0
  %143 = vmatprep.subr.mxu0 0.0
  %144 = vmatpush1.msra.mxu0 0.0
  %145 = vmatprep.subr.mxu0 0.0
  %146 = vmatpush1.msra.mxu0 0.0
  %147 = vmatprep.subr.mxu0 0.0
  %148 = vmatpush1.msra.mxu0 0.0
  %149 = vmatprep.subr.mxu0 0.0
  %150 = vmatpush1.msra.mxu0 0.0
  %151 = vmatprep.subr.mxu0 0.0
  %152 = vmatpush1.msra.mxu0 0.0
  %153 = vmatprep.subr.mxu0 0.0
  %154 = vmatpush1.msra.mxu0 0.0
  %155 = vmatprep.subr.mxu0 0.0
  %156 = vmatpush1.msra.mxu0 0.0
  %157 = vmatprep.subr.mxu0 0.0
  %158 = vmatpush1.msra.mxu0 0.0
  %159 = vmatprep.subr.mxu0 0.0
  %160 = vmatpush1.msra.mxu0 0.0
  %161 = vmatprep.subr.mxu0 0.0
  %162 = vmatpush1.msra.mxu0 0.0
  %163 = vmatprep.subr.mxu0 0.0
  %164 = vmatpush1.msra.mxu0 0.0
  %165 = vmatprep.subr.mxu0 0.0
  %166 = vmatpush1.msra.mxu0 0.0
  %167 = vmatprep.subr.mxu0 0.0
  %168 = vmatpush1.msra.mxu0 0.0
  %169 = vmatprep.subr.mxu0 0.0
  %170 = vmatpush1.msra.mxu0 0.0
  %171 = vmatprep.subr.mxu0 0.0
  %172 = vmatpush1.msra.mxu0 0.0
  %173 = vmatprep.mubr.f32.mxu0 0.0
  %174 = vmatmul.mubr.f32.gmra.mrb[0].mxu0 %v74
  %v175 = vpop.f32.mrb[0].mxu0
  %v176 = vadd.f32 %v55, %v175
  %v177 = vpop.f32.mrb[0].mxu0
  %v178 = vadd.f32 %v59, %v177
  %179 = vmatprep.mubr.f32.mxu0 0.0
  %180 = vmatmul.mubr.f32.gmra.mrb[0].mxu0 %v77
  %v181 = vpop.f32.mrb[0].mxu0
  %v182 = vadd.f32 %v55, %v181
  %v183 = vpop.f32.mrb[0].mxu0
  %v184 = vadd.f32 %v59, %v183
  %185 = vmatprep.mubr.f32.mxu0 0.0
  %186 = vmatmul.mubr.f32.gmra.mrb[0].mxu0 %v80
  %v187 = vpop.f32.mrb[0].mxu0
  %v188 = vadd.f32 %v55, %v187
  %v189 = vpop.f32.mrb[0].mxu0
  %v190 = vadd.f32 %v59, %v189
  %191 = vmatprep.mubr.f32.mxu0 0.0
  %192 = vmatmul.mubr.f32.gmra.mrb[0].mxu0 %v83
  %v193 = vpop.f32.mrb[0].mxu0
  %v194 = vadd.f32 %v55, %v193
  %v195 = vpop.f32.mrb[0].mxu0
  %v196 = vadd.f32 %v59, %v195
  %197 = vmatprep.mubr.f32.mxu0 0.0
  %198 = vmatmul.mubr.f32.gmra.mrb[0].mxu0 %v86
  %v199 = vpop.f32.mrb[0].mxu0
  %v200 = vadd.f32 %v55, %v199
  %v201 = vpop.f32.mrb[0].mxu0
  %v202 = vadd.f32 %v59, %v201
  %203 = vmatprep.mubr.f32.mxu0 0.0
  %204 = vmatmul.mubr.f32.gmra.mrb[0].mxu0 %v89
  %v205 = vpop.f32.mrb[0].mxu0
  %v206 = vadd.f32 %v55, %v205
  %v207 = vpop.f32.mrb[0].mxu0
  %v208 = vadd.f32 %v59, %v207
  %209 = vmatprep.mubr.f32.mxu0 0.0
  %210 = vmatmul.mubr.f32.gmra.mrb[0].mxu0 %v92
  %v211 = vpop.f32.mrb[0].mxu0
  %v212 = vadd.f32 %v55, %v211
  %v213 = vpop.f32.mrb[0].mxu0
  %v214 = vadd.f32 %v59, %v213
  %215 = vmatprep.mubr.f32.mxu0 0.0
  %216 = vmatmul.mubr.f32.gmra.mrb[0].mxu0 %v95
  %v217 = vpop.f32.mrb[0].mxu0
  %v218 = vadd.f32 %v55, %v217
  %v219 = vpop.f32.mrb[0].mxu0
  %v220 = vadd.f32 %v59, %v219
  %221 = vmatprep.mubr.f32.mxu0 0.0
  %222 = vmatmul.mubr.f32.gmra.mrb[0].mxu0 %v98
  %v223 = vpop.f32.mrb[0].mxu0
  %v224 = vadd.f32 %v55, %v223
  %v225 = vpop.f32.mrb[0].mxu0
  %v226 = vadd.f32 %v59, %v225
  %227 = vmatprep.mubr.f32.mxu0 0.0
  %228 = vmatmul.mubr.f32.gmra.mrb[0].mxu0 %v101
  %v229 = vpop.f32.mrb[0].mxu0
  %v230 = vadd.f32 %v55, %v229
  %v231 = vpop.f32.mrb[0].mxu0
  %v232 = vadd.f32 %v59, %v231
  %233 = vmatprep.mubr.f32.mxu0 0.0
  %234 = vmatmul.mubr.f32.gmra.mrb[0].mxu0 %v104
  %v235 = vpop.f32.mrb[0].mxu0
  %v236 = vadd.f32 %v55, %v235
  %v237 = vpop.f32.mrb[0].mxu0
  %v238 = vadd.f32 %v59, %v237
  %239 = vmatprep.mubr.f32.mxu0 0.0
  %240 = vmatmul.mubr.f32.gmra.mrb[0].mxu0 %v107
  %v241 = vpop.f32.mrb[0].mxu0
  %v242 = vadd.f32 %v55, %v241
  %v243 = vpop.f32.mrb[0].mxu0
  %v244 = vadd.f32 %v59, %v243
  %245 = vdwg.mxu0
  %246 = vmatprep.subr.mxu0 %v29
  %247 = vmatpush1.msra.mxu0 %v28
  %248 = vmatprep.subr.mxu0 %v33
  %249 = vmatpush1.msra.mxu0 %v32
  %250 = vmatprep.subr.mxu0 %v37
  %251 = vmatpush1.msra.mxu0 %v36
  %252 = vmatprep.subr.mxu0 %v41
  %253 = vmatpush1.msra.mxu0 %v40
  %254 = vmatprep.subr.mxu0 %v45
  %255 = vmatpush1.msra.mxu0 %v44
  %256 = vmatprep.subr.mxu0 %v49
  %257 = vmatpush1.msra.mxu0 %v48
  %258 = vmatprep.subr.mxu0 0.0
  %259 = vmatpush1.msra.mxu0 0.0
  %260 = vmatprep.subr.mxu0 0.0
  %261 = vmatpush1.msra.mxu0 0.0
  %262 = vmatprep.subr.mxu0 0.0
  %263 = vmatpush1.msra.mxu0 0.0
  %264 = vmatprep.subr.mxu0 0.0
  %265 = vmatpush1.msra.mxu0 0.0
  %266 = vmatprep.subr.mxu0 0.0
  %267 = vmatpush1.msra.mxu0 0.0
  %268 = vmatprep.subr.mxu0 0.0
  %269 = vmatpush1.msra.mxu0 0.0
  %270 = vmatprep.subr.mxu0 0.0
  %271 = vmatpush1.msra.mxu0 0.0
  %272 = vmatprep.subr.mxu0 0.0
  %273 = vmatpush1.msra.mxu0 0.0
  %274 = vmatprep.subr.mxu0 0.0
  %275 = vmatpush1.msra.mxu0 0.0
  %276 = vmatprep.subr.mxu0 0.0
  %277 = vmatpush1.msra.mxu0 0.0
  %278 = vmatprep.subr.mxu0 0.0
  %279 = vmatpush1.msra.mxu0 0.0
  %280 = vmatprep.subr.mxu0 0.0
  %281 = vmatpush1.msra.mxu0 0.0
  %282 = vmatprep.subr.mxu0 0.0
  %283 = vmatpush1.msra.mxu0 0.0
  %284 = vmatprep.subr.mxu0 0.0
  %285 = vmatpush1.msra.mxu0 0.0
  %286 = vmatprep.subr.mxu0 0.0
  %287 = vmatpush1.msra.mxu0 0.0
  %288 = vmatprep.subr.mxu0 0.0
  %289 = vmatpush1.msra.mxu0 0.0
  %290 = vmatprep.subr.mxu0 0.0
  %291 = vmatpush1.msra.mxu0 0.0
  %292 = vmatprep.subr.mxu0 0.0
  %293 = vmatpush1.msra.mxu0 0.0
  %294 = vmatprep.subr.mxu0 0.0
  %295 = vmatpush1.msra.mxu0 0.0
  %296 = vmatprep.subr.mxu0 0.0
  %297 = vmatpush1.msra.mxu0 0.0
  %298 = vmatprep.subr.mxu0 0.0
  %299 = vmatpush1.msra.mxu0 0.0
  %300 = vmatprep.subr.mxu0 0.0
  %301 = vmatpush1.msra.mxu0 0.0
  %302 = vmatprep.subr.mxu0 0.0
  %303 = vmatpush1.msra.mxu0 0.0
  %304 = vmatprep.subr.mxu0 0.0
  %305 = vmatpush1.msra.mxu0 0.0
  %306 = vmatprep.subr.mxu0 0.0
  %307 = vmatpush1.msra.mxu0 0.0
  %308 = vmatprep.subr.mxu0 0.0
  %309 = vmatpush1.msra.mxu0 0.0
  %310 = vmatprep.mubr.f32.mxu0 0.0
  %311 = vmatmul.mubr.f32.gmra.mrb[0].mxu0 %v74
  %v312 = vpop.f32.mrb[0].mxu0
  %v313 = vadd.f32 %v63, %v312
  %v314 = vpop.f32.mrb[0].mxu0
  %v315 = vadd.f32 %v67, %v314
  %316 = vmatprep.mubr.f32.mxu0 0.0
  %317 = vmatmul.mubr.f32.gmra.mrb[0].mxu0 %v77
  %v318 = vpop.f32.mrb[0].mxu0
  %v319 = vadd.f32 %v63, %v318
  %v320 = vpop.f32.mrb[0].mxu0
  %v321 = vadd.f32 %v67, %v320
  %322 = vmatprep.mubr.f32.mxu0 0.0
  %323 = vmatmul.mubr.f32.gmra.mrb[0].mxu0 %v80
  %v324 = vpop.f32.mrb[0].mxu0
  %v325 = vadd.f32 %v63, %v324
  %v326 = vpop.f32.mrb[0].mxu0
  %v327 = vadd.f32 %v67, %v326
  %328 = vmatprep.mubr.f32.mxu0 0.0
  %329 = vmatmul.mubr.f32.gmra.mrb[0].mxu0 %v83
  %v330 = vpop.f32.mrb[0].mxu0
  %v331 = vadd.f32 %v63, %v330
  %v332 = vpop.f32.mrb[0].mxu0
  %v333 = vadd.f32 %v67, %v332
  %334 = vmatprep.mubr.f32.mxu0 0.0
  %335 = vmatmul.mubr.f32.gmra.mrb[0].mxu0 %v86
  %v336 = vpop.f32.mrb[0].mxu0
  %v337 = vadd.f32 %v63, %v336
  %v338 = vpop.f32.mrb[0].mxu0
  %v339 = vadd.f32 %v67, %v338
  %340 = vmatprep.mubr.f32.mxu0 0.0
  %341 = vmatmul.mubr.f32.gmra.mrb[0].mxu0 %v89
  %v342 = vpop.f32.mrb[0].mxu0
  %v343 = vadd.f32 %v63, %v342
  %v344 = vpop.f32.mrb[0].mxu0
  %v345 = vadd.f32 %v67, %v344
  %346 = vmatprep.mubr.f32.mxu0 0.0
  %347 = vmatmul.mubr.f32.gmra.mrb[0].mxu0 %v92
  %v348 = vpop.f32.mrb[0].mxu0
  %v349 = vadd.f32 %v63, %v348
  %v350 = vpop.f32.mrb[0].mxu0
  %v351 = vadd.f32 %v67, %v350
  %352 = vmatprep.mubr.f32.mxu0 0.0
  %353 = vmatmul.mubr.f32.gmra.mrb[0].mxu0 %v95
  %v354 = vpop.f32.mrb[0].mxu0
  %v355 = vadd.f32 %v63, %v354
  %v356 = vpop.f32.mrb[0].mxu0
  %v357 = vadd.f32 %v67, %v356
  %358 = vmatprep.mubr.f32.mxu0 0.0
  %359 = vmatmul.mubr.f32.gmra.mrb[0].mxu0 %v98
  %v360 = vpop.f32.mrb[0].mxu0
  %v361 = vadd.f32 %v63, %v360
  %v362 = vpop.f32.mrb[0].mxu0
  %v363 = vadd.f32 %v67, %v362
  %364 = vmatprep.mubr.f32.mxu0 0.0
  %365 = vmatmul.mubr.f32.gmra.mrb[0].mxu0 %v101
  %v366 = vpop.f32.mrb[0].mxu0
  %v367 = vadd.f32 %v63, %v366
  %v368 = vpop.f32.mrb[0].mxu0
  %v369 = vadd.f32 %v67, %v368
  %370 = vmatprep.mubr.f32.mxu0 0.0
  %371 = vmatmul.mubr.f32.gmra.mrb[0].mxu0 %v104
  %v372 = vpop.f32.mrb[0].mxu0
  %v373 = vadd.f32 %v63, %v372
  %v374 = vpop.f32.mrb[0].mxu0
  %v375 = vadd.f32 %v67, %v374
  %376 = vmatprep.mubr.f32.mxu0 0.0
  %377 = vmatmul.mubr.f32.gmra.mrb[0].mxu0 %v107
  %v378 = vpop.f32.mrb[0].mxu0
  %v379 = vadd.f32 %v63, %v378
  %v380 = vpop.f32.mrb[0].mxu0
  %v381 = vadd.f32 %v67, %v380
  %382 = vdwg.mxu0
  %383 = vst [vmem:[%s3] sm:$0xff] %v176
  %384 = vst [vmem:[%s3 + $0x8] sm:$0xff] %v178
  %385 = vst [vmem:[%s3 + $0x10] sm:$0xff] %v313
  %386 = vst [vmem:[%s3 + $0x18] sm:$0xff] %v315
  %387 = vst [vmem:[%s3 + $0x20] sm:$0xff] %v182
  %388 = vst [vmem:[%s3 + $0x28] sm:$0xff] %v184
  %389 = vst [vmem:[%s3 + $0x30] sm:$0xff] %v319
  %390 = vst [vmem:[%s3 + $0x38] sm:$0xff] %v321
  %391 = vst [vmem:[%s3 + $0x40] sm:$0xff] %v188
  %392 = vst [vmem:[%s3 + $0x48] sm:$0xff] %v190
  %393 = vst [vmem:[%s3 + $0x50] sm:$0xff] %v325
  %394 = vst [vmem:[%s3 + $0x58] sm:$0xff] %v327
  %395 = vst [vmem:[%s3 + $0x60] sm:$0xff] %v194
  %396 = vst [vmem:[%s3 + $0x68] sm:$0xff] %v196
  %397 = vst [vmem:[%s3 + $0x70] sm:$0xff] %v331
  %398 = vst [vmem:[%s3 + $0x78] sm:$0xff] %v333
  %399 = vst [vmem:[%s3 + $0x80] sm:$0xff] %v200
  %400 = vst [vmem:[%s3 + $0x88] sm:$0xff] %v202
  %401 = vst [vmem:[%s3 + $0x90] sm:$0xff] %v337
  %402 = vst [vmem:[%s3 + $0x98] sm:$0xff] %v339
  %403 = vst [vmem:[%s3 + $0xa0] sm:$0xff] %v206
  %404 = vst [vmem:[%s3 + $0xa8] sm:$0xff] %v208
  %405 = vst [vmem:[%s3 + $0xb0] sm:$0xff] %v343
  %406 = vst [vmem:[%s3 + $0xb8] sm:$0xff] %v345
  %407 = vst [vmem:[%s3 + $0xc0] sm:$0xff] %v212
  %408 = vst [vmem:[%s3 + $0xc8] sm:$0xff] %v214
  %409 = vst [vmem:[%s3 + $0xd0] sm:$0xff] %v349
  %410 = vst [vmem:[%s3 + $0xd8] sm:$0xff] %v351
  %411 = vst [vmem:[%s3 + $0xe0] sm:$0xff] %v218
  %412 = vst [vmem:[%s3 + $0xe8] sm:$0xff] %v220
  %413 = vst [vmem:[%s3 + $0xf0] sm:$0xff] %v355
  %414 = vst [vmem:[%s3 + $0xf8] sm:$0xff] %v357
  %415 = vst [vmem:[%s3 + $0x100] sm:$0xff] %v224
  %416 = vst [vmem:[%s3 + $0x108] sm:$0xff] %v226
  %417 = vst [vmem:[%s3 + $0x110] sm:$0xff] %v361
  %418 = vst [vmem:[%s3 + $0x118] sm:$0xff] %v363
  %419 = vst [vmem:[%s3 + $0x120] sm:$0xff] %v230
  %420 = vst [vmem:[%s3 + $0x128] sm:$0xff] %v232
  %421 = vst [vmem:[%s3 + $0x130] sm:$0xff] %v367
  %422 = vst [vmem:[%s3 + $0x138] sm:$0xff] %v369
  %423 = vst [vmem:[%s3 + $0x140] sm:$0xff] %v236
  %424 = vst [vmem:[%s3 + $0x148] sm:$0xff] %v238
  %425 = vst [vmem:[%s3 + $0x150] sm:$0xff] %v373
  %426 = vst [vmem:[%s3 + $0x158] sm:$0xff] %v375
  %427 = vst [vmem:[%s3 + $0x160] sm:$0xff] %v242
  %428 = vst [vmem:[%s3 + $0x168] sm:$0xff] %v244
  %429 = vst [vmem:[%s3 + $0x170] sm:$0xff] %v379
  %430 = vst [vmem:[%s3 + $0x178] sm:$0xff] %v381
  // Predicated region
  $region14: #{lstm_language_model_forward.3} parent=0 // pred_check
    _
  $region15: #{lstm_language_model_forward.3} parent=0 // pred_check_branch
    %432 = sbr.rel (0) target = $region17
  $region16: #{lstm_language_model_forward.3} parent=0 // pred_region
    _
  $region17: #{lstm_language_model_forward.3} parent=0 // pred_fallthru
    _
  // Predicated region
  $region18: #{lstm_language_model_forward.3} parent=0 // pred_check
    _
  $region19: #{lstm_language_model_forward.3} parent=0 // pred_check_branch
    %434 = sbr.rel (0) target = $region21
  $region20: #{lstm_language_model_forward.3} parent=0 // pred_region
    _
  $region21: #{lstm_language_model_forward.3} parent=0 // pred_fallthru
    _

// kernel: lstm_language_model_forward.4
$region0: #{lstm_language_model_forward.4}
  #allocation0 [shape = 'u32[]', space=smem, size = 0x4, offset = 0x4, fixed_abs, tag = 'smem constant byte address 0x4 - core index']
  #allocation1 [shape = 'u32[144,128]{1,0:T(1,128)}', space=vmem, size = 0x12000, scoped, tag = 'internal scratch']
  #allocation2 [shape = 'f32[8,128]{1,0:T(8,128)}', space=vmem, size = 0x1000, scoped, tag = 'scratch operand']
  #allocation3 [shape = 'f32[8,128]{1,0:T(8,128)}', space=vmem, size = 0x1000, scoped, tag = 'scratch operand']
  %s0 = inlined_call_operand.vmem [shape: f32[12,8,512], index: 0, kind: input, shape index: {}]
  %s1 = inlined_call_operand.vmem [shape: f32[128,512], index: 1, kind: input, shape index: {}]
  %s2 = inlined_call_operand.vmem [shape: f32[12,8,128], index: 2, kind: output, shape index: {}]
  %s3 = sld [smem:[#allocation0]]
  $region45: #{lstm_language_model_forward.4} parent=0
    _
  %s5 = ssub.s32 1, %s3
  %s6 = scalar_select 0, %s5, %s3
  loop: start=0, step=1, limit=5
  $region2: #{lstm_language_model_forward.4} parent=0 // loop_pre_header
    _
  $region3: #{lstm_language_model_forward.4} parent=0 // loop_header
    %s8 = sphi 0, %s12
    %p9 = scmp.ge.s32.totalorder %s8, 5
    %s15 = sphi 0, %s27
    %s16 = sphi 0, %s23
    %s17 = sphi 0, %s15
    %s18 = sphi 0, %s16
    %s19 = sphi 0, %s17
    %s20 = sphi 0, %s18
    %s32 = sphi 0, %s34
    %s35 = sphi 0, %s32
    %s36 = sphi 0, %s35
    %s52 = sphi 0, %s36
    %s56 = sphi 0, %s56
    %s58 = sphi 0, %s56
    %s59 = sphi 0, %s58
    %s73 = sphi 0, %s59
    %s81 = sphi 0, %s83
    %s84 = sphi 0, %s81
    %s85 = sphi 0, %s84
    %s101 = sphi 0, %s85
  $region4: #{lstm_language_model_forward.4} parent=0 // loop_header_branch
    %11 = sbr.rel (%p9) target = $region8
  $region5: #{lstm_language_model_forward.4} parent=0 // loop_body
    %s13 = ssub.s32 %s8, 1
    %s14 = ssub.s32 %s8, 2
    %s21 = sadd.s32 1, %s16
    %p22 = scmp.ge.s32.totalorder %s21, 3
    %s23 = scalar_select %p22, 0, %s21
    %s24 = sadd.s32 1, %s15
    %s25 = scalar_select %p22, %s24, %s15
    %p26 = scmp.ge.s32.totalorder %s25, 1
    %s27 = scalar_select %p26, 0, %s25
    %s28 = ssub.s32 %s16, %s23
    %s29 = ssub.s32 %s15, %s27
    %s30 = sor.u32 %s28, %s29
    %p31 = scmp.eq.s32.totalorder %s30, 0
    %s33 = sadd.s32 %s32, 1
    %s34 = scalar_select %p31, %s32, %s33
    %p37 = pneg %p31
    %p38 = scmp.eq.s32.totalorder %s8, 2
    %p39 = por %p37, %p38
    %p40 = scmp.ne.s32.totalorder %s32, %s35
    %p41 = scmp.eq.s32.totalorder %s8, 0
    %p42 = por %p40, %p41
    %p43 = scmp.ne.s32.totalorder %s32, %s35
    %p44 = scmp.eq.s32.totalorder %s13, 2
    %p45 = por %p43, %p44
    %p46 = scmp.ne.s32.totalorder %s35, %s36
    %p47 = scmp.eq.s32.totalorder %s13, 0
    %p48 = por %p46, %p47
    %p49 = scmp.ne.s32.totalorder %s35, %s36
    %p50 = scmp.eq.s32.totalorder %s14, 2
    %p51 = por %p49, %p50
    %p53 = scmp.ne.s32.totalorder %s36, %s52
    %p54 = scmp.eq.s32.totalorder %s14, 0
    %p55 = por %p53, %p54
    %s57 = sadd.s32 %s56, 1
    %p60 = scmp.eq.s32.totalorder %s8, 2
    %p61 = scmp.ne.s32.totalorder %s56, %s58
    %p62 = scmp.eq.s32.totalorder %s8, 0
    %p63 = por %p61, %p62
    %p64 = scmp.ne.s32.totalorder %s56, %s58
    %p65 = scmp.eq.s32.totalorder %s13, 2
    %p66 = por %p64, %p65
    %p67 = scmp.ne.s32.totalorder %s58, %s59
    %p68 = scmp.eq.s32.totalorder %s13, 0
    %p69 = por %p67, %p68
    %p70 = scmp.ne.s32.totalorder %s58, %s59
    %p71 = scmp.eq.s32.totalorder %s14, 2
    %p72 = por %p70, %p71
    %p74 = scmp.ne.s32.totalorder %s59, %s73
    %p75 = scmp.eq.s32.totalorder %s14, 0
    %p76 = por %p74, %p75
    %s77 = ssub.s32 %s16, %s23
    %s78 = ssub.s32 %s15, %s27
    %s79 = sor.u32 %s77, %s78
    %p80 = scmp.eq.s32.totalorder %s79, 0
    %s82 = sadd.s32 %s81, 1
    %s83 = scalar_select %p80, %s81, %s82
    %p86 = pneg %p80
    %p87 = scmp.eq.s32.totalorder %s8, 2
    %p88 = por %p86, %p87
    %p89 = scmp.ne.s32.totalorder %s81, %s84
    %p90 = scmp.eq.s32.totalorder %s8, 0
    %p91 = por %p89, %p90
    %p92 = scmp.ne.s32.totalorder %s81, %s84
    %p93 = scmp.eq.s32.totalorder %s13, 2
    %p94 = por %p92, %p93
    %p95 = scmp.ne.s32.totalorder %s84, %s85
    %p96 = scmp.eq.s32.totalorder %s13, 0
    %p97 = por %p95, %p96
    %p98 = scmp.ne.s32.totalorder %s84, %s85
    %p99 = scmp.eq.s32.totalorder %s14, 2
    %p100 = por %p98, %p99
    %p102 = scmp.ne.s32.totalorder %s85, %s101
    %p103 = scmp.eq.s32.totalorder %s14, 0
    %p104 = por %p102, %p103
    %p105 = scmp.le.s32.totalorder 1, %s8
    %p106 = scmp.lt.s32.totalorder %s8, 4
    %p107 = pnand %p105, %p106
    %p108 = pneg %p107
    // Predicated region
    $region9: #{lstm_language_model_forward.4} parent=5 // pred_check
      _
    $region10: #{lstm_language_model_forward.4} parent=5 // pred_check_branch
      %110 = sbr.rel (%p107) target = $region12
    $region11: #{lstm_language_model_forward.4} parent=5 // pred_region
      %s111 = ssub.s32 %s8, 1
      // Predicated region
      $region13: #{lstm_language_model_forward.4} parent=11 // pred_check
        %p112 = pneg %p69
      $region14: #{lstm_language_model_forward.4} parent=11 // pred_check_branch
        %114 = sbr.rel (%p112) target = $region16
      $region15: #{lstm_language_model_forward.4} parent=11 // pred_region
        _
      $region16: #{lstm_language_model_forward.4} parent=11 // pred_fallthru
        _
    $region12: #{lstm_language_model_forward.4} parent=5 // pred_fallthru
      _
    %p115 = scmp.lt.s32.totalorder %s8, 3
    // Predicated region
    $region17: #{lstm_language_model_forward.4} parent=5 // pred_check
      %p116 = pneg %p115
    $region18: #{lstm_language_model_forward.4} parent=5 // pred_check_branch
      %118 = sbr.rel (%p116) target = $region20
    $region19: #{lstm_language_model_forward.4} parent=5 // pred_region
      // Predicated region
      $region21: #{lstm_language_model_forward.4} parent=19 // pred_check
        %p119 = pneg %p42
      $region22: #{lstm_language_model_forward.4} parent=19 // pred_check_branch
        %121 = sbr.rel (%p119) target = $region24
      $region23: #{lstm_language_model_forward.4} parent=19 // pred_region
        %s122 = smul.u32 4, %s16
        %p123 = scmp.lt.s32.totalorder %s122, 11
        %s124 = scalar_select %p123, %s122, 11
        %p125 = scmp.lt.s32.totalorder %s15, 0
        %s126 = scalar_select %p125, %s15, 0
        %s127 = smul.addr %s126, 4
        %s128 = smul.addr %s124, 4
        %s129 = sadd.s32 %s127, %s128
        %s130 = smul.addr %s129, 8
        %s131 = scalar_lea.vmem %s0, %s130
        %s132 = smul.u32 4, %s16
      $region24: #{lstm_language_model_forward.4} parent=19 // pred_fallthru
        _
    $region20: #{lstm_language_model_forward.4} parent=5 // pred_fallthru
      _
    %p133 = scmp.le.s32.totalorder 1, %s8
    %p134 = scmp.lt.s32.totalorder %s8, 4
    %p135 = pnand %p133, %p134
    %p136 = pneg %p135
    // Predicated region
    $region25: #{lstm_language_model_forward.4} parent=5 // pred_check
      _
    $region26: #{lstm_language_model_forward.4} parent=5 // pred_check_branch
      %138 = sbr.rel (%p135) target = $region28
    $region27: #{lstm_language_model_forward.4} parent=5 // pred_region
      %s139 = ssub.s32 %s8, 1
      %s140 = smul.u32 4, %s18
      %p141 = scmp.lt.s32.totalorder %s140, 11
      %s142 = scalar_select %p141, %s140, 11
      %p143 = scmp.lt.s32.totalorder %s17, 0
      %s144 = scalar_select %p143, %s17, 0
      %s145 = smul.addr %s144, 4
      %s146 = smul.addr %s142, 4
      %s147 = sadd.s32 %s145, %s146
      %s148 = smul.addr %s147, 8
      %s149 = scalar_lea.vmem %s0, %s148
      %p150 = pneg %p48
      %p151 = pneg %p45
      %p152 = pneg %p69
      %p153 = pneg %p66
      %p154 = pneg %p97
      %p155 = pneg %p94
      %s156 = smul.u32 4, %s18
      %p157 = scmp.lt.s32.totalorder %s156, 11
      %s158 = scalar_select %p157, %s156, 11
      %p159 = scmp.lt.s32.totalorder %s17, 0
      %s160 = scalar_select %p159, %s17, 0
      %s161 = sadd.s32 %s160, %s158
      %s162 = smul.addr %s161, 8
      %s163 = scalar_lea.vmem %s2, %s162
      %s164 = smul.u32 4, %s18
      %p165 = scmp.lt.s32.totalorder %s164, 11
      %s166 = scalar_select %p165, %s164, 11
      %p167 = scmp.lt.s32.totalorder %s17, 0
      %s168 = scalar_select %p167, %s17, 0
      %s169 = smul.addr %s168, 4
      %s170 = smul.addr %s166, 4
      %s171 = sadd.s32 %s169, %s170
      %s172 = smul.addr %s171, 8
      %s173 = scalar_lea.vmem %s0, %s172
      %s174 = smul.u32 4, %s18
      %s175 = smul.u32 4, %s18
      %p176 = scmp.lt.s32.totalorder %s175, 11
      %s177 = scalar_select %p176, %s175, 11
      %p178 = scmp.lt.s32.totalorder %s17, 0
      %s179 = scalar_select %p178, %s17, 0
      %s180 = sadd.s32 %s179, %s177
      %s181 = smul.addr %s180, 8
      %s182 = scalar_lea.vmem %s2, %s181
      %s183 = smul.u32 4, %s18
      %p184 = scmp.eq.s32.totalorder %s18, 0
      // Predicated region
      $region29: #{lstm_language_model_forward.4} parent=27 // pred_check
        %p185 = pneg %p184
      $region30: #{lstm_language_model_forward.4} parent=27 // pred_check_branch
        %187 = sbr.rel (%p185) target = $region32
      $region31: #{lstm_language_model_forward.4} parent=27 // pred_region
        %188 = vst [vmem:[#allocation2] sm:$0xff] 0.0
        %189 = vst [vmem:[#allocation3] sm:$0xff] 0.0
      $region32: #{lstm_language_model_forward.4} parent=27 // pred_fallthru
        _
      %v190 = vld [vmem:[#allocation2] sm:$0xff]
      %v191 = vld [vmem:[#allocation3] sm:$0xff]
      %v192 = vld [vmem:[%s173] sm:$0xff]
      %v193 = vld [vmem:[%s173 + $0x8] sm:$0xff]
      %v194 = vld [vmem:[%s173 + $0x10] sm:$0xff]
      %v195 = vld [vmem:[%s173 + $0x18] sm:$0xff]
      %v196 = vld [vmem:[%s1] sm:$0xff]
      %v197 = vld [vmem:[%s1 + $0x8] sm:$0xff]
      %v198 = vld [vmem:[%s1 + $0x10] sm:$0xff]
      %v199 = vld [vmem:[%s1 + $0x18] sm:$0xff]
      %v200 = vld [vmem:[%s1 + $0x20] sm:$0xff]
      %v201 = vld [vmem:[%s1 + $0x28] sm:$0xff]
      %v202 = vld [vmem:[%s1 + $0x30] sm:$0xff]
      %v203 = vld [vmem:[%s1 + $0x38] sm:$0xff]
      %v204 = vld [vmem:[%s1 + $0x40] sm:$0xff]
      %v205 = vld [vmem:[%s1 + $0x48] sm:$0xff]
      %v206 = vld [vmem:[%s1 + $0x50] sm:$0xff]
      %v207 = vld [vmem:[%s1 + $0x58] sm:$0xff]
      %v208 = vld [vmem:[%s1 + $0x60] sm:$0xff]
      %v209 = vld [vmem:[%s1 + $0x68] sm:$0xff]
      %v210 = vld [vmem:[%s1 + $0x70] sm:$0xff]
      %v211 = vld [vmem:[%s1 + $0x78] sm:$0xff]
      %v212 = vld [vmem:[%s1 + $0x80] sm:$0xff]
      %v213 = vld [vmem:[%s1 + $0x88] sm:$0xff]
      %v214 = vld [vmem:[%s1 + $0x90] sm:$0xff]
      %v215 = vld [vmem:[%s1 + $0x98] sm:$0xff]
      %v216 = vld [vmem:[%s1 + $0xa0] sm:$0xff]
      %v217 = vld [vmem:[%s1 + $0xa8] sm:$0xff]
      %v218 = vld [vmem:[%s1 + $0xb0] sm:$0xff]
      %v219 = vld [vmem:[%s1 + $0xb8] sm:$0xff]
      %v220 = vld [vmem:[%s1 + $0xc0] sm:$0xff]
      %v221 = vld [vmem:[%s1 + $0xc8] sm:$0xff]
      %v222 = vld [vmem:[%s1 + $0xd0] sm:$0xff]
      %v223 = vld [vmem:[%s1 + $0xd8] sm:$0xff]
      %v224 = vld [vmem:[%s1 + $0xe0] sm:$0xff]
      %v225 = vld [vmem:[%s1 + $0xe8] sm:$0xff]
      %v226 = vld [vmem:[%s1 + $0xf0] sm:$0xff]
      %v227 = vld [vmem:[%s1 + $0xf8] sm:$0xff]
      %v228 = vld [vmem:[%s1 + $0x100] sm:$0xff]
      %v229 = vld [vmem:[%s1 + $0x108] sm:$0xff]
      %v230 = vld [vmem:[%s1 + $0x110] sm:$0xff]
      %v231 = vld [vmem:[%s1 + $0x118] sm:$0xff]
      %v232 = vld [vmem:[%s1 + $0x120] sm:$0xff]
      %v233 = vld [vmem:[%s1 + $0x128] sm:$0xff]
      %v234 = vld [vmem:[%s1 + $0x130] sm:$0xff]
      %v235 = vld [vmem:[%s1 + $0x138] sm:$0xff]
      %v236 = vld [vmem:[%s1 + $0x140] sm:$0xff]
      %v237 = vld [vmem:[%s1 + $0x148] sm:$0xff]
      %v238 = vld [vmem:[%s1 + $0x150] sm:$0xff]
      %v239 = vld [vmem:[%s1 + $0x158] sm:$0xff]
      %v240 = vld [vmem:[%s1 + $0x160] sm:$0xff]
      %v241 = vld [vmem:[%s1 + $0x168] sm:$0xff]
      %v242 = vld [vmem:[%s1 + $0x170] sm:$0xff]
      %v243 = vld [vmem:[%s1 + $0x178] sm:$0xff]
      %v244 = vld [vmem:[%s1 + $0x180] sm:$0xff]
      %v245 = vld [vmem:[%s1 + $0x188] sm:$0xff]
      %v246 = vld [vmem:[%s1 + $0x190] sm:$0xff]
      %v247 = vld [vmem:[%s1 + $0x198] sm:$0xff]
      %v248 = vld [vmem:[%s1 + $0x1a0] sm:$0xff]
      %v249 = vld [vmem:[%s1 + $0x1a8] sm:$0xff]
      %v250 = vld [vmem:[%s1 + $0x1b0] sm:$0xff]
      %v251 = vld [vmem:[%s1 + $0x1b8] sm:$0xff]
      %v252 = vld [vmem:[%s1 + $0x1c0] sm:$0xff]
      %v253 = vld [vmem:[%s1 + $0x1c8] sm:$0xff]
      %v254 = vld [vmem:[%s1 + $0x1d0] sm:$0xff]
      %v255 = vld [vmem:[%s1 + $0x1d8] sm:$0xff]
      %v256 = vld [vmem:[%s1 + $0x1e0] sm:$0xff]
      %v257 = vld [vmem:[%s1 + $0x1e8] sm:$0xff]
      %v258 = vld [vmem:[%s1 + $0x1f0] sm:$0xff]
      %v259 = vld [vmem:[%s1 + $0x1f8] sm:$0xff]
      %260 = vmatprep.subr.mxu0 %v197
      %261 = vmatpush1.msra.mxu0 %v196
      %262 = vmatprep.subr.mxu0 %v201
      %263 = vmatpush1.msra.mxu0 %v200
      %264 = vmatprep.subr.mxu0 %v205
      %265 = vmatpush1.msra.mxu0 %v204
      %266 = vmatprep.subr.mxu0 %v209
      %267 = vmatpush1.msra.mxu0 %v208
      %268 = vmatprep.subr.mxu0 %v213
      %269 = vmatpush1.msra.mxu0 %v212
      %270 = vmatprep.subr.mxu0 %v217
      %271 = vmatpush1.msra.mxu0 %v216
      %272 = vmatprep.subr.mxu0 %v221
      %273 = vmatpush1.msra.mxu0 %v220
      %274 = vmatprep.subr.mxu0 %v225
      %275 = vmatpush1.msra.mxu0 %v224
      %276 = vmatprep.subr.mxu0 %v229
      %277 = vmatpush1.msra.mxu0 %v228
      %278 = vmatprep.subr.mxu0 %v233
      %279 = vmatpush1.msra.mxu0 %v232
      %280 = vmatprep.subr.mxu0 %v237
      %281 = vmatpush1.msra.mxu0 %v236
      %282 = vmatprep.subr.mxu0 %v241
      %283 = vmatpush1.msra.mxu0 %v240
      %284 = vmatprep.subr.mxu0 %v245
      %285 = vmatpush1.msra.mxu0 %v244
      %286 = vmatprep.subr.mxu0 %v249
      %287 = vmatpush1.msra.mxu0 %v248
      %288 = vmatprep.subr.mxu0 %v253
      %289 = vmatpush1.msra.mxu0 %v252
      %290 = vmatprep.subr.mxu0 %v257
      %291 = vmatpush1.msra.mxu0 %v256
      %292 = vmatprep.subr.mxu0 0.0
      %293 = vmatpush1.msra.mxu0 0.0
      %294 = vmatprep.subr.mxu0 0.0
      %295 = vmatpush1.msra.mxu0 0.0
      %296 = vmatprep.subr.mxu0 0.0
      %297 = vmatpush1.msra.mxu0 0.0
      %298 = vmatprep.subr.mxu0 0.0
      %299 = vmatpush1.msra.mxu0 0.0
      %300 = vmatprep.subr.mxu0 0.0
      %301 = vmatpush1.msra.mxu0 0.0
      %302 = vmatprep.subr.mxu0 0.0
      %303 = vmatpush1.msra.mxu0 0.0
      %304 = vmatprep.subr.mxu0 0.0
      %305 = vmatpush1.msra.mxu0 0.0
      %306 = vmatprep.subr.mxu0 0.0
      %307 = vmatpush1.msra.mxu0 0.0
      %308 = vmatprep.subr.mxu0 0.0
      %309 = vmatpush1.msra.mxu0 0.0
      %310 = vmatprep.subr.mxu0 0.0
      %311 = vmatpush1.msra.mxu0 0.0
      %312 = vmatprep.subr.mxu0 0.0
      %313 = vmatpush1.msra.mxu0 0.0
      %314 = vmatprep.subr.mxu0 0.0
      %315 = vmatpush1.msra.mxu0 0.0
      %316 = vmatprep.subr.mxu0 0.0
      %317 = vmatpush1.msra.mxu0 0.0
      %318 = vmatprep.subr.mxu0 0.0
      %319 = vmatpush1.msra.mxu0 0.0
      %320 = vmatprep.subr.mxu0 0.0
      %321 = vmatpush1.msra.mxu0 0.0
      %322 = vmatprep.subr.mxu0 0.0
      %323 = vmatpush1.msra.mxu0 0.0
      %324 = vmatprep.mubr.f32.mxu0 0.0
      %325 = vmatmul.mubr.f32.gmra.mrb[0].mxu0 %v190
      %v326 = vpop.f32.mrb[0].mxu0
      %v327 = vadd.f32 0.0, %v326
      %v328 = vpop.f32.mrb[0].mxu0
      %v329 = vadd.f32 0.0, %v328
      %330 = vdwg.mxu0
      %331 = vmatprep.subr.mxu0 %v199
      %332 = vmatpush1.msra.mxu0 %v198
      %333 = vmatprep.subr.mxu0 %v203
      %334 = vmatpush1.msra.mxu0 %v202
      %335 = vmatprep.subr.mxu0 %v207
      %336 = vmatpush1.msra.mxu0 %v206
      %337 = vmatprep.subr.mxu0 %v211
      %338 = vmatpush1.msra.mxu0 %v210
      %339 = vmatprep.subr.mxu0 %v215
      %340 = vmatpush1.msra.mxu0 %v214
      %341 = vmatprep.subr.mxu0 %v219
      %342 = vmatpush1.msra.mxu0 %v218
      %343 = vmatprep.subr.mxu0 %v223
      %344 = vmatpush1.msra.mxu0 %v222
      %345 = vmatprep.subr.mxu0 %v227
      %346 = vmatpush1.msra.mxu0 %v226
      %347 = vmatprep.subr.mxu0 %v231
      %348 = vmatpush1.msra.mxu0 %v230
      %349 = vmatprep.subr.mxu0 %v235
      %350 = vmatpush1.msra.mxu0 %v234
      %351 = vmatprep.subr.mxu0 %v239
      %352 = vmatpush1.msra.mxu0 %v238
      %353 = vmatprep.subr.mxu0 %v243
      %354 = vmatpush1.msra.mxu0 %v242
      %355 = vmatprep.subr.mxu0 %v247
      %356 = vmatpush1.msra.mxu0 %v246
      %357 = vmatprep.subr.mxu0 %v251
      %358 = vmatpush1.msra.mxu0 %v250
      %359 = vmatprep.subr.mxu0 %v255
      %360 = vmatpush1.msra.mxu0 %v254
      %361 = vmatprep.subr.mxu0 %v259
      %362 = vmatpush1.msra.mxu0 %v258
      %363 = vmatprep.subr.mxu0 0.0
      %364 = vmatpush1.msra.mxu0 0.0
      %365 = vmatprep.subr.mxu0 0.0
      %366 = vmatpush1.msra.mxu0 0.0
      %367 = vmatprep.subr.mxu0 0.0
      %368 = vmatpush1.msra.mxu0 0.0
      %369 = vmatprep.subr.mxu0 0.0
      %370 = vmatpush1.msra.mxu0 0.0
      %371 = vmatprep.subr.mxu0 0.0
      %372 = vmatpush1.msra.mxu0 0.0
      %373 = vmatprep.subr.mxu0 0.0
      %374 = vmatpush1.msra.mxu0 0.0
      %375 = vmatprep.subr.mxu0 0.0
      %376 = vmatpush1.msra.mxu0 0.0
      %377 = vmatprep.subr.mxu0 0.0
      %378 = vmatpush1.msra.mxu0 0.0
      %379 = vmatprep.subr.mxu0 0.0
      %380 = vmatpush1.msra.mxu0 0.0
      %381 = vmatprep.subr.mxu0 0.0
      %382 = vmatpush1.msra.mxu0 0.0
      %383 = vmatprep.subr.mxu0 0.0
      %384 = vmatpush1.msra.mxu0 0.0
      %385 = vmatprep.subr.mxu0 0.0
      %386 = vmatpush1.msra.mxu0 0.0
      %387 = vmatprep.subr.mxu0 0.0
      %388 = vmatpush1.msra.mxu0 0.0
      %389 = vmatprep.subr.mxu0 0.0
      %390 = vmatpush1.msra.mxu0 0.0
      %391 = vmatprep.subr.mxu0 0.0
      %392 = vmatpush1.msra.mxu0 0.0
      %393 = vmatprep.subr.mxu0 0.0
      %394 = vmatpush1.msra.mxu0 0.0
      %395 = vmatprep.mubr.f32.mxu0 0.0
      %396 = vmatmul.mubr.f32.gmra.mrb[0].mxu0 %v190
      %v397 = vpop.f32.mrb[0].mxu0
      %v398 = vadd.f32 0.0, %v397
      %v399 = vpop.f32.mrb[0].mxu0
      %v400 = vadd.f32 0.0, %v399
      %401 = vdwg.mxu0
      %v402 = vadd.f32 %v192, %v327
      %v403 = vadd.f32 %v193, %v329
      %v404 = vadd.f32 %v194, %v398
      %v405 = vadd.f32 %v195, %v400
      %v406 = vxor.u32 %v402, 2147483648
      %v407 = vmul.f32 %v406, 1.442695
      %v408 = vpow.pop %v407
      %v409 = vadd.f32 %v408, 1.0
      %v410 = vrcp.pop %v409
      %v411 = vmul.f32 1.0, %v410
      %v412 = vxor.u32 %v403, 2147483648
      %v413 = vmul.f32 %v412, 1.442695
      %v414 = vpow.pop %v413
      %v415 = vadd.f32 %v414, 1.0
      %v416 = vrcp.pop %v415
      %v417 = vmul.f32 1.0, %v416
      %v418 = vtanh.pop %v404
      %v419 = vxor.u32 %v405, 2147483648
      %v420 = vmul.f32 %v419, 1.442695
      %v421 = vpow.pop %v420
      %v422 = vadd.f32 %v421, 1.0
      %v423 = vrcp.pop %v422
      %v424 = vmul.f32 1.0, %v423
      %v425 = vmul.f32 %v417, %v191
      %v426 = vmul.f32 %v411, %v418
      %v427 = vadd.f32 %v425, %v426
      %v428 = vtanh.pop %v427
      %v429 = vmul.f32 %v424, %v428
      %430 = vst [vmem:[%s182] sm:$0xff] %v429
      %s431 = scalar_lea.vmem %s173, 32
      %v432 = vld [vmem:[%s431] sm:$0xff]
      %v433 = vld [vmem:[%s431 + $0x8] sm:$0xff]
      %v434 = vld [vmem:[%s431 + $0x10] sm:$0xff]
      %v435 = vld [vmem:[%s431 + $0x18] sm:$0xff]
      %v436 = vld [vmem:[%s1] sm:$0xff]
      %v437 = vld [vmem:[%s1 + $0x8] sm:$0xff]
      %v438 = vld [vmem:[%s1 + $0x10] sm:$0xff]
      %v439 = vld [vmem:[%s1 + $0x18] sm:$0xff]
      %v440 = vld [vmem:[%s1 + $0x20] sm:$0xff]
      %v441 = vld [vmem:[%s1 + $0x28] sm:$0xff]
      %v442 = vld [vmem:[%s1 + $0x30] sm:$0xff]
      %v443 = vld [vmem:[%s1 + $0x38] sm:$0xff]
      %v444 = vld [vmem:[%s1 + $0x40] sm:$0xff]
      %v445 = vld [vmem:[%s1 + $0x48] sm:$0xff]
      %v446 = vld [vmem:[%s1 + $0x50] sm:$0xff]
      %v447 = vld [vmem:[%s1 + $0x58] sm:$0xff]
      %v448 = vld [vmem:[%s1 + $0x60] sm:$0xff]
      %v449 = vld [vmem:[%s1 + $0x68] sm:$0xff]
      %v450 = vld [vmem:[%s1 + $0x70] sm:$0xff]
      %v451 = vld [vmem:[%s1 + $0x78] sm:$0xff]
      %v452 = vld [vmem:[%s1 + $0x80] sm:$0xff]
      %v453 = vld [vmem:[%s1 + $0x88] sm:$0xff]
      %v454 = vld [vmem:[%s1 + $0x90] sm:$0xff]
      %v455 = vld [vmem:[%s1 + $0x98] sm:$0xff]
      %v456 = vld [vmem:[%s1 + $0xa0] sm:$0xff]
      %v457 = vld [vmem:[%s1 + $0xa8] sm:$0xff]
      %v458 = vld [vmem:[%s1 + $0xb0] sm:$0xff]
      %v459 = vld [vmem:[%s1 + $0xb8] sm:$0xff]
      %v460 = vld [vmem:[%s1 + $0xc0] sm:$0xff]
      %v461 = vld [vmem:[%s1 + $0xc8] sm:$0xff]
      %v462 = vld [vmem:[%s1 + $0xd0] sm:$0xff]
      %v463 = vld [vmem:[%s1 + $0xd8] sm:$0xff]
      %v464 = vld [vmem:[%s1 + $0xe0] sm:$0xff]
      %v465 = vld [vmem:[%s1 + $0xe8] sm:$0xff]
      %v466 = vld [vmem:[%s1 + $0xf0] sm:$0xff]
      %v467 = vld [vmem:[%s1 + $0xf8] sm:$0xff]
      %v468 = vld [vmem:[%s1 + $0x100] sm:$0xff]
      %v469 = vld [vmem:[%s1 + $0x108] sm:$0xff]
      %v470 = vld [vmem:[%s1 + $0x110] sm:$0xff]
      %v471 = vld [vmem:[%s1 + $0x118] sm:$0xff]
      %v472 = vld [vmem:[%s1 + $0x120] sm:$0xff]
      %v473 = vld [vmem:[%s1 + $0x128] sm:$0xff]
      %v474 = vld [vmem:[%s1 + $0x130] sm:$0xff]
      %v475 = vld [vmem:[%s1 + $0x138] sm:$0xff]
      %v476 = vld [vmem:[%s1 + $0x140] sm:$0xff]
      %v477 = vld [vmem:[%s1 + $0x148] sm:$0xff]
      %v478 = vld [vmem:[%s1 + $0x150] sm:$0xff]
      %v479 = vld [vmem:[%s1 + $0x158] sm:$0xff]
      %v480 = vld [vmem:[%s1 + $0x160] sm:$0xff]
      %v481 = vld [vmem:[%s1 + $0x168] sm:$0xff]
      %v482 = vld [vmem:[%s1 + $0x170] sm:$0xff]
      %v483 = vld [vmem:[%s1 + $0x178] sm:$0xff]
      %v484 = vld [vmem:[%s1 + $0x180] sm:$0xff]
      %v485 = vld [vmem:[%s1 + $0x188] sm:$0xff]
      %v486 = vld [vmem:[%s1 + $0x190] sm:$0xff]
      %v487 = vld [vmem:[%s1 + $0x198] sm:$0xff]
      %v488 = vld [vmem:[%s1 + $0x1a0] sm:$0xff]
      %v489 = vld [vmem:[%s1 + $0x1a8] sm:$0xff]
      %v490 = vld [vmem:[%s1 + $0x1b0] sm:$0xff]
      %v491 = vld [vmem:[%s1 + $0x1b8] sm:$0xff]
      %v492 = vld [vmem:[%s1 + $0x1c0] sm:$0xff]
      %v493 = vld [vmem:[%s1 + $0x1c8] sm:$0xff]
      %v494 = vld [vmem:[%s1 + $0x1d0] sm:$0xff]
      %v495 = vld [vmem:[%s1 + $0x1d8] sm:$0xff]
      %v496 = vld [vmem:[%s1 + $0x1e0] sm:$0xff]
      %v497 = vld [vmem:[%s1 + $0x1e8] sm:$0xff]
      %v498 = vld [vmem:[%s1 + $0x1f0] sm:$0xff]
      %v499 = vld [vmem:[%s1 + $0x1f8] sm:$0xff]
      %500 = vmatprep.subr.mxu0 %v437
      %501 = vmatpush1.msra.mxu0 %v436
      %502 = vmatprep.subr.mxu0 %v441
      %503 = vmatpush1.msra.mxu0 %v440
      %504 = vmatprep.subr.mxu0 %v445
      %505 = vmatpush1.msra.mxu0 %v444
      %506 = vmatprep.subr.mxu0 %v449
      %507 = vmatpush1.msra.mxu0 %v448
      %508 = vmatprep.subr.mxu0 %v453
      %509 = vmatpush1.msra.mxu0 %v452
      %510 = vmatprep.subr.mxu0 %v457
      %511 = vmatpush1.msra.mxu0 %v456
      %512 = vmatprep.subr.mxu0 %v461
      %513 = vmatpush1.msra.mxu0 %v460
      %514 = vmatprep.subr.mxu0 %v465
      %515 = vmatpush1.msra.mxu0 %v464
      %516 = vmatprep.subr.mxu0 %v469
      %517 = vmatpush1.msra.mxu0 %v468
      %518 = vmatprep.subr.mxu0 %v473
      %519 = vmatpush1.msra.mxu0 %v472
      %520 = vmatprep.subr.mxu0 %v477
      %521 = vmatpush1.msra.mxu0 %v476
      %522 = vmatprep.subr.mxu0 %v481
      %523 = vmatpush1.msra.mxu0 %v480
      %524 = vmatprep.subr.mxu0 %v485
      %525 = vmatpush1.msra.mxu0 %v484
      %526 = vmatprep.subr.mxu0 %v489
      %527 = vmatpush1.msra.mxu0 %v488
      %528 = vmatprep.subr.mxu0 %v493
      %529 = vmatpush1.msra.mxu0 %v492
      %530 = vmatprep.subr.mxu0 %v497
      %531 = vmatpush1.msra.mxu0 %v496
      %532 = vmatprep.subr.mxu0 0.0
      %533 = vmatpush1.msra.mxu0 0.0
      %534 = vmatprep.subr.mxu0 0.0
      %535 = vmatpush1.msra.mxu0 0.0
      %536 = vmatprep.subr.mxu0 0.0
      %537 = vmatpush1.msra.mxu0 0.0
      %538 = vmatprep.subr.mxu0 0.0
      %539 = vmatpush1.msra.mxu0 0.0
      %540 = vmatprep.subr.mxu0 0.0
      %541 = vmatpush1.msra.mxu0 0.0
      %542 = vmatprep.subr.mxu0 0.0
      %543 = vmatpush1.msra.mxu0 0.0
      %544 = vmatprep.subr.mxu0 0.0
      %545 = vmatpush1.msra.mxu0 0.0
      %546 = vmatprep.subr.mxu0 0.0
      %547 = vmatpush1.msra.mxu0 0.0
      %548 = vmatprep.subr.mxu0 0.0
      %549 = vmatpush1.msra.mxu0 0.0
      %550 = vmatprep.subr.mxu0 0.0
      %551 = vmatpush1.msra.mxu0 0.0
      %552 = vmatprep.subr.mxu0 0.0
      %553 = vmatpush1.msra.mxu0 0.0
      %554 = vmatprep.subr.mxu0 0.0
      %555 = vmatpush1.msra.mxu0 0.0
      %556 = vmatprep.subr.mxu0 0.0
      %557 = vmatpush1.msra.mxu0 0.0
      %558 = vmatprep.subr.mxu0 0.0
      %559 = vmatpush1.msra.mxu0 0.0
      %560 = vmatprep.subr.mxu0 0.0
      %561 = vmatpush1.msra.mxu0 0.0
      %562 = vmatprep.subr.mxu0 0.0
      %563 = vmatpush1.msra.mxu0 0.0
      %564 = vmatprep.mubr.f32.mxu0 0.0
      %565 = vmatmul.mubr.f32.gmra.mrb[0].mxu0 %v429
      %v566 = vpop.f32.mrb[0].mxu0
      %v567 = vadd.f32 0.0, %v566
      %v568 = vpop.f32.mrb[0].mxu0
      %v569 = vadd.f32 0.0, %v568
      %570 = vdwg.mxu0
      %571 = vmatprep.subr.mxu0 %v439
      %572 = vmatpush1.msra.mxu0 %v438
      %573 = vmatprep.subr.mxu0 %v443
      %574 = vmatpush1.msra.mxu0 %v442
      %575 = vmatprep.subr.mxu0 %v447
      %576 = vmatpush1.msra.mxu0 %v446
      %577 = vmatprep.subr.mxu0 %v451
      %578 = vmatpush1.msra.mxu0 %v450
      %579 = vmatprep.subr.mxu0 %v455
      %580 = vmatpush1.msra.mxu0 %v454
      %581 = vmatprep.subr.mxu0 %v459
      %582 = vmatpush1.msra.mxu0 %v458
      %583 = vmatprep.subr.mxu0 %v463
      %584 = vmatpush1.msra.mxu0 %v462
      %585 = vmatprep.subr.mxu0 %v467
      %586 = vmatpush1.msra.mxu0 %v466
      %587 = vmatprep.subr.mxu0 %v471
      %588 = vmatpush1.msra.mxu0 %v470
      %589 = vmatprep.subr.mxu0 %v475
      %590 = vmatpush1.msra.mxu0 %v474
      %591 = vmatprep.subr.mxu0 %v479
      %592 = vmatpush1.msra.mxu0 %v478
      %593 = vmatprep.subr.mxu0 %v483
      %594 = vmatpush1.msra.mxu0 %v482
      %595 = vmatprep.subr.mxu0 %v487
      %596 = vmatpush1.msra.mxu0 %v486
      %597 = vmatprep.subr.mxu0 %v491
      %598 = vmatpush1.msra.mxu0 %v490
      %599 = vmatprep.subr.mxu0 %v495
      %600 = vmatpush1.msra.mxu0 %v494
      %601 = vmatprep.subr.mxu0 %v499
      %602 = vmatpush1.msra.mxu0 %v498
      %603 = vmatprep.subr.mxu0 0.0
      %604 = vmatpush1.msra.mxu0 0.0
      %605 = vmatprep.subr.mxu0 0.0
      %606 = vmatpush1.msra.mxu0 0.0
      %607 = vmatprep.subr.mxu0 0.0
      %608 = vmatpush1.msra.mxu0 0.0
      %609 = vmatprep.subr.mxu0 0.0
      %610 = vmatpush1.msra.mxu0 0.0
      %611 = vmatprep.subr.mxu0 0.0
      %612 = vmatpush1.msra.mxu0 0.0
      %613 = vmatprep.subr.mxu0 0.0
      %614 = vmatpush1.msra.mxu0 0.0
      %615 = vmatprep.subr.mxu0 0.0
      %616 = vmatpush1.msra.mxu0 0.0
      %617 = vmatprep.subr.mxu0 0.0
      %618 = vmatpush1.msra.mxu0 0.0
      %619 = vmatprep.subr.mxu0 0.0
      %620 = vmatpush1.msra.mxu0 0.0
      %621 = vmatprep.subr.mxu0 0.0
      %622 = vmatpush1.msra.mxu0 0.0
      %623 = vmatprep.subr.mxu0 0.0
      %624 = vmatpush1.msra.mxu0 0.0
      %625 = vmatprep.subr.mxu0 0.0
      %626 = vmatpush1.msra.mxu0 0.0
      %627 = vmatprep.subr.mxu0 0.0
      %628 = vmatpush1.msra.mxu0 0.0
      %629 = vmatprep.subr.mxu0 0.0
      %630 = vmatpush1.msra.mxu0 0.0
      %631 = vmatprep.subr.mxu0 0.0
      %632 = vmatpush1.msra.mxu0 0.0
      %633 = vmatprep.subr.mxu0 0.0
      %634 = vmatpush1.msra.mxu0 0.0
      %635 = vmatprep.mubr.f32.mxu0 0.0
      %636 = vmatmul.mubr.f32.gmra.mrb[0].mxu0 %v429
      %v637 = vpop.f32.mrb[0].mxu0
      %v638 = vadd.f32 0.0, %v637
      %v639 = vpop.f32.mrb[0].mxu0
      %v640 = vadd.f32 0.0, %v639
      %641 = vdwg.mxu0
      %v642 = vadd.f32 %v432, %v567
      %v643 = vadd.f32 %v433, %v569
      %v644 = vadd.f32 %v434, %v638
      %v645 = vadd.f32 %v435, %v640
      %v646 = vxor.u32 %v642, 2147483648
      %v647 = vmul.f32 %v646, 1.442695
      %v648 = vpow.pop %v647
      %v649 = vadd.f32 %v648, 1.0
      %v650 = vrcp.pop %v649
      %v651 = vmul.f32 1.0, %v650
      %v652 = vxor.u32 %v643, 2147483648
      %v653 = vmul.f32 %v652, 1.442695
      %v654 = vpow.pop %v653
      %v655 = vadd.f32 %v654, 1.0
      %v656 = vrcp.pop %v655
      %v657 = vmul.f32 1.0, %v656
      %v658 = vtanh.pop %v644
      %v659 = vxor.u32 %v645, 2147483648
      %v660 = vmul.f32 %v659, 1.442695
      %v661 = vpow.pop %v660
      %v662 = vadd.f32 %v661, 1.0
      %v663 = vrcp.pop %v662
      %v664 = vmul.f32 1.0, %v663
      %v665 = vmul.f32 %v657, %v427
      %v666 = vmul.f32 %v651, %v658
      %v667 = vadd.f32 %v665, %v666
      %v668 = vtanh.pop %v667
      %v669 = vmul.f32 %v664, %v668
      %s670 = scalar_lea.vmem %s182, 8
      %671 = vst [vmem:[%s670] sm:$0xff] %v669
      %s672 = scalar_lea.vmem %s173, 64
      %v673 = vld [vmem:[%s672] sm:$0xff]
      %v674 = vld [vmem:[%s672 + $0x8] sm:$0xff]
      %v675 = vld [vmem:[%s672 + $0x10] sm:$0xff]
      %v676 = vld [vmem:[%s672 + $0x18] sm:$0xff]
      %v677 = vld [vmem:[%s1] sm:$0xff]
      %v678 = vld [vmem:[%s1 + $0x8] sm:$0xff]
      %v679 = vld [vmem:[%s1 + $0x10] sm:$0xff]
      %v680 = vld [vmem:[%s1 + $0x18] sm:$0xff]
      %v681 = vld [vmem:[%s1 + $0x20] sm:$0xff]
      %v682 = vld [vmem:[%s1 + $0x28] sm:$0xff]
      %v683 = vld [vmem:[%s1 + $0x30] sm:$0xff]
      %v684 = vld [vmem:[%s1 + $0x38] sm:$0xff]
      %v685 = vld [vmem:[%s1 + $0x40] sm:$0xff]
      %v686 = vld [vmem:[%s1 + $0x48] sm:$0xff]
      %v687 = vld [vmem:[%s1 + $0x50] sm:$0xff]
      %v688 = vld [vmem:[%s1 + $0x58] sm:$0xff]
      %v689 = vld [vmem:[%s1 + $0x60] sm:$0xff]
      %v690 = vld [vmem:[%s1 + $0x68] sm:$0xff]
      %v691 = vld [vmem:[%s1 + $0x70] sm:$0xff]
      %v692 = vld [vmem:[%s1 + $0x78] sm:$0xff]
      %v693 = vld [vmem:[%s1 + $0x80] sm:$0xff]
      %v694 = vld [vmem:[%s1 + $0x88] sm:$0xff]
      %v695 = vld [vmem:[%s1 + $0x90] sm:$0xff]
      %v696 = vld [vmem:[%s1 + $0x98] sm:$0xff]
      %v697 = vld [vmem:[%s1 + $0xa0] sm:$0xff]
      %v698 = vld [vmem:[%s1 + $0xa8] sm:$0xff]
      %v699 = vld [vmem:[%s1 + $0xb0] sm:$0xff]
      %v700 = vld [vmem:[%s1 + $0xb8] sm:$0xff]
      %v701 = vld [vmem:[%s1 + $0xc0] sm:$0xff]
      %v702 = vld [vmem:[%s1 + $0xc8] sm:$0xff]
      %v703 = vld [vmem:[%s1 + $0xd0] sm:$0xff]
      %v704 = vld [vmem:[%s1 + $0xd8] sm:$0xff]
      %v705 = vld [vmem:[%s1 + $0xe0] sm:$0xff]
      %v706 = vld [vmem:[%s1 + $0xe8] sm:$0xff]
      %v707 = vld [vmem:[%s1 + $0xf0] sm:$0xff]
      %v708 = vld [vmem:[%s1 + $0xf8] sm:$0xff]
      %v709 = vld [vmem:[%s1 + $0x100] sm:$0xff]
      %v710 = vld [vmem:[%s1 + $0x108] sm:$0xff]
      %v711 = vld [vmem:[%s1 + $0x110] sm:$0xff]
      %v712 = vld [vmem:[%s1 + $0x118] sm:$0xff]
      %v713 = vld [vmem:[%s1 + $0x120] sm:$0xff]
      %v714 = vld [vmem:[%s1 + $0x128] sm:$0xff]
      %v715 = vld [vmem:[%s1 + $0x130] sm:$0xff]
      %v716 = vld [vmem:[%s1 + $0x138] sm:$0xff]
      %v717 = vld [vmem:[%s1 + $0x140] sm:$0xff]
      %v718 = vld [vmem:[%s1 + $0x148] sm:$0xff]
      %v719 = vld [vmem:[%s1 + $0x150] sm:$0xff]
      %v720 = vld [vmem:[%s1 + $0x158] sm:$0xff]
      %v721 = vld [vmem:[%s1 + $0x160] sm:$0xff]
      %v722 = vld [vmem:[%s1 + $0x168] sm:$0xff]
      %v723 = vld [vmem:[%s1 + $0x170] sm:$0xff]
      %v724 = vld [vmem:[%s1 + $0x178] sm:$0xff]
      %v725 = vld [vmem:[%s1 + $0x180] sm:$0xff]
      %v726 = vld [vmem:[%s1 + $0x188] sm:$0xff]
      %v727 = vld [vmem:[%s1 + $0x190] sm:$0xff]
      %v728 = vld [vmem:[%s1 + $0x198] sm:$0xff]
      %v729 = vld [vmem:[%s1 + $0x1a0] sm:$0xff]
      %v730 = vld [vmem:[%s1 + $0x1a8] sm:$0xff]
      %v731 = vld [vmem:[%s1 + $0x1b0] sm:$0xff]
      %v732 = vld [vmem:[%s1 + $0x1b8] sm:$0xff]
      %v733 = vld [vmem:[%s1 + $0x1c0] sm:$0xff]
      %v734 = vld [vmem:[%s1 + $0x1c8] sm:$0xff]
      %v735 = vld [vmem:[%s1 + $0x1d0] sm:$0xff]
      %v736 = vld [vmem:[%s1 + $0x1d8] sm:$0xff]
      %v737 = vld [vmem:[%s1 + $0x1e0] sm:$0xff]
      %v738 = vld [vmem:[%s1 + $0x1e8] sm:$0xff]
      %v739 = vld [vmem:[%s1 + $0x1f0] sm:$0xff]
      %v740 = vld [vmem:[%s1 + $0x1f8] sm:$0xff]
      %741 = vmatprep.subr.mxu0 %v678
      %742 = vmatpush1.msra.mxu0 %v677
      %743 = vmatprep.subr.mxu0 %v682
      %744 = vmatpush1.msra.mxu0 %v681
      %745 = vmatprep.subr.mxu0 %v686
      %746 = vmatpush1.msra.mxu0 %v685
      %747 = vmatprep.subr.mxu0 %v690
      %748 = vmatpush1.msra.mxu0 %v689
      %749 = vmatprep.subr.mxu0 %v694
      %750 = vmatpush1.msra.mxu0 %v693
      %751 = vmatprep.subr.mxu0 %v698
      %752 = vmatpush1.msra.mxu0 %v697
      %753 = vmatprep.subr.mxu0 %v702
      %754 = vmatpush1.msra.mxu0 %v701
      %755 = vmatprep.subr.mxu0 %v706
      %756 = vmatpush1.msra.mxu0 %v705
      %757 = vmatprep.subr.mxu0 %v710
      %758 = vmatpush1.msra.mxu0 %v709
      %759 = vmatprep.subr.mxu0 %v714
      %760 = vmatpush1.msra.mxu0 %v713
      %761 = vmatprep.subr.mxu0 %v718
      %762 = vmatpush1.msra.mxu0 %v717
      %763 = vmatprep.subr.mxu0 %v722
      %764 = vmatpush1.msra.mxu0 %v721
      %765 = vmatprep.subr.mxu0 %v726
      %766 = vmatpush1.msra.mxu0 %v725
      %767 = vmatprep.subr.mxu0 %v730
      %768 = vmatpush1.msra.mxu0 %v729
      %769 = vmatprep.subr.mxu0 %v734
      %770 = vmatpush1.msra.mxu0 %v733
      %771 = vmatprep.subr.mxu0 %v738
      %772 = vmatpush1.msra.mxu0 %v737
      %773 = vmatprep.subr.mxu0 0.0
      %774 = vmatpush1.msra.mxu0 0.0
      %775 = vmatprep.subr.mxu0 0.0
      %776 = vmatpush1.msra.mxu0 0.0
      %777 = vmatprep.subr.mxu0 0.0
      %778 = vmatpush1.msra.mxu0 0.0
      %779 = vmatprep.subr.mxu0 0.0
      %780 = vmatpush1.msra.mxu0 0.0
      %781 = vmatprep.subr.mxu0 0.0
      %782 = vmatpush1.msra.mxu0 0.0
      %783 = vmatprep.subr.mxu0 0.0
      %784 = vmatpush1.msra.mxu0 0.0
      %785 = vmatprep.subr.mxu0 0.0
      %786 = vmatpush1.msra.mxu0 0.0
      %787 = vmatprep.subr.mxu0 0.0
      %788 = vmatpush1.msra.mxu0 0.0
      %789 = vmatprep.subr.mxu0 0.0
      %790 = vmatpush1.msra.mxu0 0.0
      %791 = vmatprep.subr.mxu0 0.0
      %792 = vmatpush1.msra.mxu0 0.0
      %793 = vmatprep.subr.mxu0 0.0
      %794 = vmatpush1.msra.mxu0 0.0
      %795 = vmatprep.subr.mxu0 0.0
      %796 = vmatpush1.msra.mxu0 0.0
      %797 = vmatprep.subr.mxu0 0.0
      %798 = vmatpush1.msra.mxu0 0.0
      %799 = vmatprep.subr.mxu0 0.0
      %800 = vmatpush1.msra.mxu0 0.0
      %801 = vmatprep.subr.mxu0 0.0
      %802 = vmatpush1.msra.mxu0 0.0
      %803 = vmatprep.subr.mxu0 0.0
      %804 = vmatpush1.msra.mxu0 0.0
      %805 = vmatprep.mubr.f32.mxu0 0.0
      %806 = vmatmul.mubr.f32.gmra.mrb[0].mxu0 %v669
      %v807 = vpop.f32.mrb[0].mxu0
      %v808 = vadd.f32 0.0, %v807
      %v809 = vpop.f32.mrb[0].mxu0
      %v810 = vadd.f32 0.0, %v809
      %811 = vdwg.mxu0
      %812 = vmatprep.subr.mxu0 %v680
      %813 = vmatpush1.msra.mxu0 %v679
      %814 = vmatprep.subr.mxu0 %v684
      %815 = vmatpush1.msra.mxu0 %v683
      %816 = vmatprep.subr.mxu0 %v688
      %817 = vmatpush1.msra.mxu0 %v687
      %818 = vmatprep.subr.mxu0 %v692
      %819 = vmatpush1.msra.mxu0 %v691
      %820 = vmatprep.subr.mxu0 %v696
      %821 = vmatpush1.msra.mxu0 %v695
      %822 = vmatprep.subr.mxu0 %v700
      %823 = vmatpush1.msra.mxu0 %v699
      %824 = vmatprep.subr.mxu0 %v704
      %825 = vmatpush1.msra.mxu0 %v703
      %826 = vmatprep.subr.mxu0 %v708
      %827 = vmatpush1.msra.mxu0 %v707
      %828 = vmatprep.subr.mxu0 %v712
      %829 = vmatpush1.msra.mxu0 %v711
      %830 = vmatprep.subr.mxu0 %v716
      %831 = vmatpush1.msra.mxu0 %v715
      %832 = vmatprep.subr.mxu0 %v720
      %833 = vmatpush1.msra.mxu0 %v719
      %834 = vmatprep.subr.mxu0 %v724
      %835 = vmatpush1.msra.mxu0 %v723
      %836 = vmatprep.subr.mxu0 %v728
      %837 = vmatpush1.msra.mxu0 %v727
      %838 = vmatprep.subr.mxu0 %v732
      %839 = vmatpush1.msra.mxu0 %v731
      %840 = vmatprep.subr.mxu0 %v736
      %841 = vmatpush1.msra.mxu0 %v735
      %842 = vmatprep.subr.mxu0 %v740
      %843 = vmatpush1.msra.mxu0 %v739
      %844 = vmatprep.subr.mxu0 0.0
      %845 = vmatpush1.msra.mxu0 0.0
      %846 = vmatprep.subr.mxu0 0.0
      %847 = vmatpush1.msra.mxu0 0.0
      %848 = vmatprep.subr.mxu0 0.0
      %849 = vmatpush1.msra.mxu0 0.0
      %850 = vmatprep.subr.mxu0 0.0
      %851 = vmatpush1.msra.mxu0 0.0
      %852 = vmatprep.subr.mxu0 0.0
      %853 = vmatpush1.msra.mxu0 0.0
      %854 = vmatprep.subr.mxu0 0.0
      %855 = vmatpush1.msra.mxu0 0.0
      %856 = vmatprep.subr.mxu0 0.0
      %857 = vmatpush1.msra.mxu0 0.0
      %858 = vmatprep.subr.mxu0 0.0
      %859 = vmatpush1.msra.mxu0 0.0
      %860 = vmatprep.subr.mxu0 0.0
      %861 = vmatpush1.msra.mxu0 0.0
      %862 = vmatprep.subr.mxu0 0.0
      %863 = vmatpush1.msra.mxu0 0.0
      %864 = vmatprep.subr.mxu0 0.0
      %865 = vmatpush1.msra.mxu0 0.0
      %866 = vmatprep.subr.mxu0 0.0
      %867 = vmatpush1.msra.mxu0 0.0
      %868 = vmatprep.subr.mxu0 0.0
      %869 = vmatpush1.msra.mxu0 0.0
      %870 = vmatprep.subr.mxu0 0.0
      %871 = vmatpush1.msra.mxu0 0.0
      %872 = vmatprep.subr.mxu0 0.0
      %873 = vmatpush1.msra.mxu0 0.0
      %874 = vmatprep.subr.mxu0 0.0
      %875 = vmatpush1.msra.mxu0 0.0
      %876 = vmatprep.mubr.f32.mxu0 0.0
      %877 = vmatmul.mubr.f32.gmra.mrb[0].mxu0 %v669
      %v878 = vpop.f32.mrb[0].mxu0
      %v879 = vadd.f32 0.0, %v878
      %v880 = vpop.f32.mrb[0].mxu0
      %v881 = vadd.f32 0.0, %v880
      %882 = vdwg.mxu0
      %v883 = vadd.f32 %v673, %v808
      %v884 = vadd.f32 %v674, %v810
      %v885 = vadd.f32 %v675, %v879
      %v886 = vadd.f32 %v676, %v881
      %v887 = vxor.u32 %v883, 2147483648
      %v888 = vmul.f32 %v887, 1.442695
      %v889 = vpow.pop %v888
      %v890 = vadd.f32 %v889, 1.0
      %v891 = vrcp.pop %v890
      %v892 = vmul.f32 1.0, %v891
      %v893 = vxor.u32 %v884, 2147483648
      %v894 = vmul.f32 %v893, 1.442695
      %v895 = vpow.pop %v894
      %v896 = vadd.f32 %v895, 1.0
      %v897 = vrcp.pop %v896
      %v898 = vmul.f32 1.0, %v897
      %v899 = vtanh.pop %v885
      %v900 = vxor.u32 %v886, 2147483648
      %v901 = vmul.f32 %v900, 1.442695
      %v902 = vpow.pop %v901
      %v903 = vadd.f32 %v902, 1.0
      %v904 = vrcp.pop %v903
      %v905 = vmul.f32 1.0, %v904
      %v906 = vmul.f32 %v898, %v667
      %v907 = vmul.f32 %v892, %v899
      %v908 = vadd.f32 %v906, %v907
      %v909 = vtanh.pop %v908
      %v910 = vmul.f32 %v905, %v909
      %s911 = scalar_lea.vmem %s182, 16
      %912 = vst [vmem:[%s911] sm:$0xff] %v910
      %s913 = scalar_lea.vmem %s173, 96
      %v914 = vld [vmem:[%s913] sm:$0xff]
      %v915 = vld [vmem:[%s913 + $0x8] sm:$0xff]
      %v916 = vld [vmem:[%s913 + $0x10] sm:$0xff]
      %v917 = vld [vmem:[%s913 + $0x18] sm:$0xff]
      %v918 = vld [vmem:[%s1] sm:$0xff]
      %v919 = vld [vmem:[%s1 + $0x8] sm:$0xff]
      %v920 = vld [vmem:[%s1 + $0x10] sm:$0xff]
      %v921 = vld [vmem:[%s1 + $0x18] sm:$0xff]
      %v922 = vld [vmem:[%s1 + $0x20] sm:$0xff]
      %v923 = vld [vmem:[%s1 + $0x28] sm:$0xff]
      %v924 = vld [vmem:[%s1 + $0x30] sm:$0xff]
      %v925 = vld [vmem:[%s1 + $0x38] sm:$0xff]
      %v926 = vld [vmem:[%s1 + $0x40] sm:$0xff]
      %v927 = vld [vmem:[%s1 + $0x48] sm:$0xff]
      %v928 = vld [vmem:[%s1 + $0x50] sm:$0xff]
      %v929 = vld [vmem:[%s1 + $0x58] sm:$0xff]
      %v930 = vld [vmem:[%s1 + $0x60] sm:$0xff]
      %v931 = vld [vmem:[%s1 + $0x68] sm:$0xff]
      %v932 = vld [vmem:[%s1 + $0x70] sm:$0xff]
      %v933 = vld [vmem:[%s1 + $0x78] sm:$0xff]
      %v934 = vld [vmem:[%s1 + $0x80] sm:$0xff]
      %v935 = vld [vmem:[%s1 + $0x88] sm:$0xff]
      %v936 = vld [vmem:[%s1 + $0x90] sm:$0xff]
      %v937 = vld [vmem:[%s1 + $0x98] sm:$0xff]
      %v938 = vld [vmem:[%s1 + $0xa0] sm:$0xff]
      %v939 = vld [vmem:[%s1 + $0xa8] sm:$0xff]
      %v940 = vld [vmem:[%s1 + $0xb0] sm:$0xff]
      %v941 = vld [vmem:[%s1 + $0xb8] sm:$0xff]
      %v942 = vld [vmem:[%s1 + $0xc0] sm:$0xff]
      %v943 = vld [vmem:[%s1 + $0xc8] sm:$0xff]
      %v944 = vld [vmem:[%s1 + $0xd0] sm:$0xff]
      %v945 = vld [vmem:[%s1 + $0xd8] sm:$0xff]
      %v946 = vld [vmem:[%s1 + $0xe0] sm:$0xff]
      %v947 = vld [vmem:[%s1 + $0xe8] sm:$0xff]
      %v948 = vld [vmem:[%s1 + $0xf0] sm:$0xff]
      %v949 = vld [vmem:[%s1 + $0xf8] sm:$0xff]
      %v950 = vld [vmem:[%s1 + $0x100] sm:$0xff]
      %v951 = vld [vmem:[%s1 + $0x108] sm:$0xff]
      %v952 = vld [vmem:[%s1 + $0x110] sm:$0xff]
      %v953 = vld [vmem:[%s1 + $0x118] sm:$0xff]
      %v954 = vld [vmem:[%s1 + $0x120] sm:$0xff]
      %v955 = vld [vmem:[%s1 + $0x128] sm:$0xff]
      %v956 = vld [vmem:[%s1 + $0x130] sm:$0xff]
      %v957 = vld [vmem:[%s1 + $0x138] sm:$0xff]
      %v958 = vld [vmem:[%s1 + $0x140] sm:$0xff]
      %v959 = vld [vmem:[%s1 + $0x148] sm:$0xff]
      %v960 = vld [vmem:[%s1 + $0x150] sm:$0xff]
      %v961 = vld [vmem:[%s1 + $0x158] sm:$0xff]
      %v962 = vld [vmem:[%s1 + $0x160] sm:$0xff]
      %v963 = vld [vmem:[%s1 + $0x168] sm:$0xff]
      %v964 = vld [vmem:[%s1 + $0x170] sm:$0xff]
      %v965 = vld [vmem:[%s1 + $0x178] sm:$0xff]
      %v966 = vld [vmem:[%s1 + $0x180] sm:$0xff]
      %v967 = vld [vmem:[%s1 + $0x188] sm:$0xff]
      %v968 = vld [vmem:[%s1 + $0x190] sm:$0xff]
      %v969 = vld [vmem:[%s1 + $0x198] sm:$0xff]
      %v970 = vld [vmem:[%s1 + $0x1a0] sm:$0xff]
      %v971 = vld [vmem:[%s1 + $0x1a8] sm:$0xff]
      %v972 = vld [vmem:[%s1 + $0x1b0] sm:$0xff]
      %v973 = vld [vmem:[%s1 + $0x1b8] sm:$0xff]
      %v974 = vld [vmem:[%s1 + $0x1c0] sm:$0xff]
      %v975 = vld [vmem:[%s1 + $0x1c8] sm:$0xff]
      %v976 = vld [vmem:[%s1 + $0x1d0] sm:$0xff]
      %v977 = vld [vmem:[%s1 + $0x1d8] sm:$0xff]
      %v978 = vld [vmem:[%s1 + $0x1e0] sm:$0xff]
      %v979 = vld [vmem:[%s1 + $0x1e8] sm:$0xff]
      %v980 = vld [vmem:[%s1 + $0x1f0] sm:$0xff]
      %v981 = vld [vmem:[%s1 + $0x1f8] sm:$0xff]
      %982 = vmatprep.subr.mxu0 %v919
      %983 = vmatpush1.msra.mxu0 %v918
      %984 = vmatprep.subr.mxu0 %v923
      %985 = vmatpush1.msra.mxu0 %v922
      %986 = vmatprep.subr.mxu0 %v927
      %987 = vmatpush1.msra.mxu0 %v926
      %988 = vmatprep.subr.mxu0 %v931
      %989 = vmatpush1.msra.mxu0 %v930
      %990 = vmatprep.subr.mxu0 %v935
      %991 = vmatpush1.msra.mxu0 %v934
      %992 = vmatprep.subr.mxu0 %v939
      %993 = vmatpush1.msra.mxu0 %v938
      %994 = vmatprep.subr.mxu0 %v943
      %995 = vmatpush1.msra.mxu0 %v942
      %996 = vmatprep.subr.mxu0 %v947
      %997 = vmatpush1.msra.mxu0 %v946
      %998 = vmatprep.subr.mxu0 %v951
      %999 = vmatpush1.msra.mxu0 %v950
      %1000 = vmatprep.subr.mxu0 %v955
      %1001 = vmatpush1.msra.mxu0 %v954
      %1002 = vmatprep.subr.mxu0 %v959
      %1003 = vmatpush1.msra.mxu0 %v958
      %1004 = vmatprep.subr.mxu0 %v963
      %1005 = vmatpush1.msra.mxu0 %v962
      %1006 = vmatprep.subr.mxu0 %v967
      %1007 = vmatpush1.msra.mxu0 %v966
      %1008 = vmatprep.subr.mxu0 %v971
      %1009 = vmatpush1.msra.mxu0 %v970
      %1010 = vmatprep.subr.mxu0 %v975
      %1011 = vmatpush1.msra.mxu0 %v974
      %1012 = vmatprep.subr.mxu0 %v979
      %1013 = vmatpush1.msra.mxu0 %v978
      %1014 = vmatprep.subr.mxu0 0.0
      %1015 = vmatpush1.msra.mxu0 0.0
      %1016 = vmatprep.subr.mxu0 0.0
      %1017 = vmatpush1.msra.mxu0 0.0
      %1018 = vmatprep.subr.mxu0 0.0
      %1019 = vmatpush1.msra.mxu0 0.0
      %1020 = vmatprep.subr.mxu0 0.0
      %1021 = vmatpush1.msra.mxu0 0.0
      %1022 = vmatprep.subr.mxu0 0.0
      %1023 = vmatpush1.msra.mxu0 0.0
      %1024 = vmatprep.subr.mxu0 0.0
      %1025 = vmatpush1.msra.mxu0 0.0
      %1026 = vmatprep.subr.mxu0 0.0
      %1027 = vmatpush1.msra.mxu0 0.0
      %1028 = vmatprep.subr.mxu0 0.0
      %1029 = vmatpush1.msra.mxu0 0.0
      %1030 = vmatprep.subr.mxu0 0.0
      %1031 = vmatpush1.msra.mxu0 0.0
      %1032 = vmatprep.subr.mxu0 0.0
      %1033 = vmatpush1.msra.mxu0 0.0
      %1034 = vmatprep.subr.mxu0 0.0
      %1035 = vmatpush1.msra.mxu0 0.0
      %1036 = vmatprep.subr.mxu0 0.0
      %1037 = vmatpush1.msra.mxu0 0.0
      %1038 = vmatprep.subr.mxu0 0.0
      %1039 = vmatpush1.msra.mxu0 0.0
      %1040 = vmatprep.subr.mxu0 0.0
      %1041 = vmatpush1.msra.mxu0 0.0
      %1042 = vmatprep.subr.mxu0 0.0
      %1043 = vmatpush1.msra.mxu0 0.0
      %1044 = vmatprep.subr.mxu0 0.0
      %1045 = vmatpush1.msra.mxu0 0.0
      %1046 = vmatprep.mubr.f32.mxu0 0.0
      %1047 = vmatmul.mubr.f32.gmra.mrb[0].mxu0 %v910
      %v1048 = vpop.f32.mrb[0].mxu0
      %v1049 = vadd.f32 0.0, %v1048
      %v1050 = vpop.f32.mrb[0].mxu0
      %v1051 = vadd.f32 0.0, %v1050
      %1052 = vdwg.mxu0
      %1053 = vmatprep.subr.mxu0 %v921
      %1054 = vmatpush1.msra.mxu0 %v920
      %1055 = vmatprep.subr.mxu0 %v925
      %1056 = vmatpush1.msra.mxu0 %v924
      %1057 = vmatprep.subr.mxu0 %v929
      %1058 = vmatpush1.msra.mxu0 %v928
      %1059 = vmatprep.subr.mxu0 %v933
      %1060 = vmatpush1.msra.mxu0 %v932
      %1061 = vmatprep.subr.mxu0 %v937
      %1062 = vmatpush1.msra.mxu0 %v936
      %1063 = vmatprep.subr.mxu0 %v941
      %1064 = vmatpush1.msra.mxu0 %v940
      %1065 = vmatprep.subr.mxu0 %v945
      %1066 = vmatpush1.msra.mxu0 %v944
      %1067 = vmatprep.subr.mxu0 %v949
      %1068 = vmatpush1.msra.mxu0 %v948
      %1069 = vmatprep.subr.mxu0 %v953
      %1070 = vmatpush1.msra.mxu0 %v952
      %1071 = vmatprep.subr.mxu0 %v957
      %1072 = vmatpush1.msra.mxu0 %v956
      %1073 = vmatprep.subr.mxu0 %v961
      %1074 = vmatpush1.msra.mxu0 %v960
      %1075 = vmatprep.subr.mxu0 %v965
      %1076 = vmatpush1.msra.mxu0 %v964
      %1077 = vmatprep.subr.mxu0 %v969
      %1078 = vmatpush1.msra.mxu0 %v968
      %1079 = vmatprep.subr.mxu0 %v973
      %1080 = vmatpush1.msra.mxu0 %v972
      %1081 = vmatprep.subr.mxu0 %v977
      %1082 = vmatpush1.msra.mxu0 %v976
      %1083 = vmatprep.subr.mxu0 %v981
      %1084 = vmatpush1.msra.mxu0 %v980
      %1085 = vmatprep.subr.mxu0 0.0
      %1086 = vmatpush1.msra.mxu0 0.0
      %1087 = vmatprep.subr.mxu0 0.0
      %1088 = vmatpush1.msra.mxu0 0.0
      %1089 = vmatprep.subr.mxu0 0.0
      %1090 = vmatpush1.msra.mxu0 0.0
      %1091 = vmatprep.subr.mxu0 0.0
      %1092 = vmatpush1.msra.mxu0 0.0
      %1093 = vmatprep.subr.mxu0 0.0
      %1094 = vmatpush1.msra.mxu0 0.0
      %1095 = vmatprep.subr.mxu0 0.0
      %1096 = vmatpush1.msra.mxu0 0.0
      %1097 = vmatprep.subr.mxu0 0.0
      %1098 = vmatpush1.msra.mxu0 0.0
      %1099 = vmatprep.subr.mxu0 0.0
      %1100 = vmatpush1.msra.mxu0 0.0
      %1101 = vmatprep.subr.mxu0 0.0
      %1102 = vmatpush1.msra.mxu0 0.0
      %1103 = vmatprep.subr.mxu0 0.0
      %1104 = vmatpush1.msra.mxu0 0.0
      %1105 = vmatprep.subr.mxu0 0.0
      %1106 = vmatpush1.msra.mxu0 0.0
      %1107 = vmatprep.subr.mxu0 0.0
      %1108 = vmatpush1.msra.mxu0 0.0
      %1109 = vmatprep.subr.mxu0 0.0
      %1110 = vmatpush1.msra.mxu0 0.0
      %1111 = vmatprep.subr.mxu0 0.0
      %1112 = vmatpush1.msra.mxu0 0.0
      %1113 = vmatprep.subr.mxu0 0.0
      %1114 = vmatpush1.msra.mxu0 0.0
      %1115 = vmatprep.subr.mxu0 0.0
      %1116 = vmatpush1.msra.mxu0 0.0
      %1117 = vmatprep.mubr.f32.mxu0 0.0
      %1118 = vmatmul.mubr.f32.gmra.mrb[0].mxu0 %v910
      %v1119 = vpop.f32.mrb[0].mxu0
      %v1120 = vadd.f32 0.0, %v1119
      %v1121 = vpop.f32.mrb[0].mxu0
      %v1122 = vadd.f32 0.0, %v1121
      %1123 = vdwg.mxu0
      %v1124 = vadd.f32 %v914, %v1049
      %v1125 = vadd.f32 %v915, %v1051
      %v1126 = vadd.f32 %v916, %v1120
      %v1127 = vadd.f32 %v917, %v1122
      %v1128 = vxor.u32 %v1124, 2147483648
      %v1129 = vmul.f32 %v1128, 1.442695
      %v1130 = vpow.pop %v1129
      %v1131 = vadd.f32 %v1130, 1.0
      %v1132 = vrcp.pop %v1131
      %v1133 = vmul.f32 1.0, %v1132
      %v1134 = vxor.u32 %v1125, 2147483648
      %v1135 = vmul.f32 %v1134, 1.442695
      %v1136 = vpow.pop %v1135
      %v1137 = vadd.f32 %v1136, 1.0
      %v1138 = vrcp.pop %v1137
      %v1139 = vmul.f32 1.0, %v1138
      %v1140 = vtanh.pop %v1126
      %v1141 = vxor.u32 %v1127, 2147483648
      %v1142 = vmul.f32 %v1141, 1.442695
      %v1143 = vpow.pop %v1142
      %v1144 = vadd.f32 %v1143, 1.0
      %v1145 = vrcp.pop %v1144
      %v1146 = vmul.f32 1.0, %v1145
      %v1147 = vmul.f32 %v1139, %v908
      %v1148 = vmul.f32 %v1133, %v1140
      %v1149 = vadd.f32 %v1147, %v1148
      %v1150 = vtanh.pop %v1149
      %v1151 = vmul.f32 %v1146, %v1150
      %s1152 = scalar_lea.vmem %s182, 24
      %1153 = vst [vmem:[%s1152] sm:$0xff] %v1151
      %1154 = vst [vmem:[#allocation2] sm:$0xff] %v1151
      %1155 = vst [vmem:[#allocation3] sm:$0xff] %v1149
      %s1156 = smul.u32 4, %s18
      %p1157 = scmp.lt.s32.totalorder %s1156, 11
      %s1158 = scalar_select %p1157, %s1156, 11
      %p1159 = scmp.lt.s32.totalorder %s17, 0
      %s1160 = scalar_select %p1159, %s17, 0
      %s1161 = sadd.s32 %s1160, %s1158
      %s1162 = smul.addr %s1161, 8
      %s1163 = scalar_lea.vmem %s2, %s1162
      // Predicated region
      $region33: #{lstm_language_model_forward.4} parent=27 // pred_check
        %p1164 = pneg %p94
      $region34: #{lstm_language_model_forward.4} parent=27 // pred_check_branch
        %1166 = sbr.rel (%p1164) target = $region36
      $region35: #{lstm_language_model_forward.4} parent=27 // pred_region
        %s1167 = smul.u32 4, %s18
      $region36: #{lstm_language_model_forward.4} parent=27 // pred_fallthru
        _
    $region28: #{lstm_language_model_forward.4} parent=5 // pred_fallthru
      _
    %p1168 = scmp.le.s32.totalorder 2, %s8
    // Predicated region
    $region37: #{lstm_language_model_forward.4} parent=5 // pred_check
      %p1169 = pneg %p1168
    $region38: #{lstm_language_model_forward.4} parent=5 // pred_check_branch
      %1171 = sbr.rel (%p1169) target = $region40
    $region39: #{lstm_language_model_forward.4} parent=5 // pred_region
      %s1172 = ssub.s32 %s8, 2
      // Predicated region
      $region41: #{lstm_language_model_forward.4} parent=39 // pred_check
        %p1173 = pneg %p100
      $region42: #{lstm_language_model_forward.4} parent=39 // pred_check_branch
        %1175 = sbr.rel (%p1173) target = $region44
      $region43: #{lstm_language_model_forward.4} parent=39 // pred_region
        %s1176 = smul.u32 4, %s20
        %p1177 = scmp.lt.s32.totalorder %s1176, 11
        %s1178 = scalar_select %p1177, %s1176, 11
        %p1179 = scmp.lt.s32.totalorder %s19, 0
        %s1180 = scalar_select %p1179, %s19, 0
        %s1181 = sadd.s32 %s1180, %s1178
        %s1182 = smul.addr %s1181, 8
        %s1183 = scalar_lea.vmem %s2, %s1182
      $region44: #{lstm_language_model_forward.4} parent=39 // pred_fallthru
        _
    $region40: #{lstm_language_model_forward.4} parent=5 // pred_fallthru
      _
  $region6: #{lstm_language_model_forward.4} parent=0 // loop_footer
    %s12 = sadd.s32 1, %s8
  $region7: #{lstm_language_model_forward.4} parent=0 // loop_footer_branch
    %7 = sbr.rel target = $region3
  $region8: #{lstm_language_model_forward.4} parent=0 // loop_exit
    _

</llo_original>
